<compile_context>
chip_gen: v5e
topology: v5e:2x2
jax: 0.10.0
libtpu: 0.0.40
codegen_flags: <defaults>
</compile_context>

<pallas_src>
import numpy as np
import jax
import jax.numpy as jnp
from jax.experimental import pallas as pl
from jax.experimental.pallas import tpu as pltpu

# ---- module hyperparameters ----
VOCAB_SIZE = 50
EMBED_SIZE = 32
C_SIZE = 8
KERNEL_NUM = 100
KERNEL_SIZES = (3, 4, 5)
SEQ_LEN = 32
BATCH = 2
LINEAR_IN = 2200

K_PAD = 128                        # kernel_num padded to a full lane width
U_MAX = max(KERNEL_SIZES)          # 5 tap-offset regions per batch in fused LHS
Q_PAD = 32                         # padded pooled-position axis (power of two)
N_TAPS = sum(KERNEL_SIZES)         # 12 -> block-diagonal contraction dim 384
CONTRACT = N_TAPS * EMBED_SIZE
ROWS_PER_BATCH = U_MAX * Q_PAD     # 160
F_DIM = Q_PAD * K_PAD              # 4096 flattened feature lanes


def _pooled_len(L, k):
    conv_out = L - k + 1                     # Conv1d (stride=1, no pad)
    return (conv_out - k) // k + 1           # MaxPool1d(k), default stride=k


POOL_LENS = tuple(_pooled_len(SEQ_LEN, k) for k in KERNEL_SIZES)   # (10, 7, 5)
P_TOTAL = sum(POOL_LENS)                                           # 22
assert KERNEL_NUM * P_TOTAL == LINEAR_IN, (KERNEL_NUM, P_TOTAL)

BANK_Q_OFF = (0, 16, 24)      # 8-aligned final q-slot offset of each conv bank
BANK_TAP_OFF = (0, 3, 7)      # cumulative tap offsets into the 12-tap axis
assert POOL_LENS[0] <= 16 and POOL_LENS[1] <= 8 and POOL_LENS[2] <= 8


def _fold_rows_into_lanes(x):
    """(R, C) -> (1, R*C) using only contiguous half-row slices + lane concat.

    R must be a power of two.  The induced (row, col) -> lane permutation is
    fixed; prepare_params applies the SAME fold to an index map so the linear
    weight matches exactly (no in-kernel reshape/transpose needed)."""
    assert x.shape[0] & (x.shape[0] - 1) == 0
    while x.shape[0] > 1:
        h = x.shape[0] // 2
        x = jnp.concatenate([x[:h, :], x[h:, :]], axis=1)
    return x


def _build_gather_idx():
    """Static (ROWS_PER_BATCH, N_TAPS) im2col index matrix into the length-33
    extended token sequence (index SEQ_LEN == zero sentinel).

    Row layout: row = u*Q_PAD + q, q being the final pooled-feature slot.
    Taps belonging to other banks stay on the sentinel, so the fused LHS is
    block-diagonal; rows with u >= k duplicate u == 0, so the in-kernel max
    over all U_MAX regions equals the true MaxPool1d."""
    idx = np.full((ROWS_PER_BATCH, N_TAPS), SEQ_LEN, dtype=np.int32)
    for bi, k in enumerate(KERNEL_SIZES):
        for u in range(U_MAX):
            u_eff = u if u < k else 0
            for p in range(POOL_LENS[bi]):
                row = u * Q_PAD + BANK_Q_OFF[bi] + p
                for j in range(k):
                    idx[row, BANK_TAP_OFF[bi] + j] = p * k + u_eff + j
    return idx


GATHER_IDX = _build_gather_idx()   # trace-time constant


# ------------------------------ Pallas kernel ------------------------------
def discriminator_kernel(lhs_ref,    # (B*160, 384) bf16  block-diagonal im2col
                         wc_ref,     # (384, 128)   bf16  stacked conv weights
                         wl_ref,     # (4096, C)    bf16  fold-permuted Linear
                         bl_ref,     # (1, C)       f32   bias (+ folded conv bias)
                         out_ref):   # (B, C)       f32   log-probs
    # All three Conv1d banks, both batch elements and every surviving tap
    # offset in ONE MXU matmul (f32 accumulation).  Conv biases were folded
    # into bl_ref on the host, so no bias add here.
    acc = jnp.dot(lhs_ref[...], wc_ref[...], preferred_element_type=jnp.float32)

    rows = []
    for b in range(BATCH):
        base = b * ROWS_PER_BATCH
        # MaxPool1d: elementwise max over U_MAX contiguous 32-row (tile-aligned)
        # regions; the result is already the final (Q_PAD, K_PAD) feature block.
        blk = acc[base:base + Q_PAD, :]
        for u in range(1, U_MAX):
            blk = jnp.maximum(blk, acc[base + u * Q_PAD:base + (u + 1) * Q_PAD, :])
        # bf16 before the lane fold (halves fold traffic; final dot is bf16).
        rows.append(_fold_rows_into_lanes(blk.astype(jnp.bfloat16)))   # (1, 4096)
    feats = jnp.concatenate(rows, axis=0)                              # (B, 4096)

    # TODO(synk): Dropout(p=0.2) is treated as identity (eval mode).
    logits = jnp.dot(feats, wl_ref[...],
                     preferred_element_type=jnp.float32) + bl_ref[...]

    # LogSoftmax(dim=1), single store.
    m = jnp.max(logits, axis=1, keepdims=True)
    z = logits - m
    out_ref[...] = z - jnp.log(jnp.sum(jnp.exp(z), axis=1, keepdims=True))


# ----------------------- one-time parameter packing -------------------------
def prepare_params(emb_table, conv_ws, conv_bs, wl, bl):
    """Run ONCE at init; everything here is hoisted off the per-call path."""
    # Embedding table + zero sentinel row (index VOCAB_SIZE), bf16.
    emb_ext = jnp.concatenate(
        [emb_table, jnp.zeros((1, EMBED_SIZE), emb_table.dtype)], axis=0
    ).astype(jnp.bfloat16)                                          # (V+1, E)

    # Stacked block-diagonal conv weight: torch (K_NUM, E, k) -> rows j*E+e,
    # channels zero-padded to 128, banks stacked vertically -> (384, 128).
    parts = []
    for w, k in zip(conv_ws, KERNEL_SIZES):
        wf = jnp.transpose(w, (2, 1, 0)).reshape(k * EMBED_SIZE, KERNEL_NUM)
        parts.append(jnp.pad(wf, ((0, 0), (0, K_PAD - KERNEL_NUM))))
    w_conv = jnp.concatenate(parts, axis=0).astype(jnp.bfloat16)

    # Linear weight permuted by the exact fold the kernel applies to features.
    # q-slot -> global pooled position g (torch concat order), -1 if padded.
    g_of_q = np.full((Q_PAD,), -1, np.int64)
    g0 = 0
    for off, n in zip(BANK_Q_OFF, POOL_LENS):
        g_of_q[off:off + n] = np.arange(g0, g0 + n)
        g0 += n
    g_col = g_of_q[:, None]                                         # (32, 1)
    ch_row = np.arange(K_PAD)[None, :]                              # (1, 128)
    valid = (g_col >= 0) & (ch_row < KERNEL_NUM)
    torch_flat = ch_row * P_TOTAL + np.where(g_col >= 0, g_col, 0)  # ch*22 + g
    idx0 = np.where(valid, torch_flat, LINEAR_IN)                   # sentinel -> zero row
    idx_fold = np.asarray(_fold_rows_into_lanes(jnp.asarray(idx0, jnp.int32)))[0]
    wl_ext = jnp.concatenate(
        [wl.T.astype(jnp.float32), jnp.zeros((1, C_SIZE), jnp.float32)], axis=0)
    wl_fold = wl_ext[idx_fold].astype(jnp.bfloat16)                 # (4096, C)

    # Fold conv biases into the linear bias (exact, f32):
    # bias_flat[ch*22 + g] = conv_bias_of_bank(g)[ch];  bl_eff = bl + wl @ bias_flat
    per_pos = jnp.concatenate(
        [jnp.tile(b[:, None], (1, n)) for b, n in zip(conv_bs, POOL_LENS)], axis=1)
    bias_flat = per_pos.reshape(LINEAR_IN)
    bl_eff = (bl.astype(jnp.float32)
              + wl.astype(jnp.float32) @ bias_flat).reshape(1, C_SIZE)

    return emb_ext, w_conv, wl_fold, bl_eff.astype(jnp.float32)


# ------------------------------ JAX wrapper ---------------------------------
@jax.jit
def discriminator_forward(x_tokens, emb_ext, w_conv, wl_fold, bl_eff):
    B = x_tokens.shape[0]
    # im2col via one static index matrix: tokens -> positions -> embeddings
    # (two gathers + one reshape; padded/off-bank taps hit the zero sentinel).
    tok_ext = jnp.concatenate(
        [x_tokens, jnp.full((B, 1), VOCAB_SIZE, x_tokens.dtype)], axis=1)
    tok_g = jnp.take(tok_ext, GATHER_IDX, axis=1)            # (B, 160, 12)
    lhs = jnp.take(emb_ext, tok_g, axis=0)                   # (B, 160, 12, E) bf16
    lhs = lhs.reshape(B * ROWS_PER_BATCH, CONTRACT)          # (B*160, 384)

    return pl.pallas_call(
        discriminator_kernel,
        out_shape=jax.ShapeDtypeStruct((B, C_SIZE), jnp.float32),
        in_specs=[pl.BlockSpec(memory_space=pltpu.MemorySpace.VMEM)] * 4,
        out_specs=pl.BlockSpec(memory_space=pltpu.MemorySpace.VMEM),
    )(lhs, w_conv, wl_fold, bl_eff)


# ----------------------- pure-JAX reference (for checking) ------------------
def reference_forward(x_tokens, emb_table, conv_ws, conv_bs, wl, bl):
    emb = jnp.take(emb_table, x_tokens, axis=0)                  # (B, L, E) f32
    B, L, _ = emb.shape
    pools = []
    for k, w, cb in zip(KERNEL_SIZES, conv_ws, conv_bs):
        L_out = L - k + 1
        fmap = jnp.zeros((B, KERNEL_NUM, L_out), jnp.float32) + cb[None, :, None]
        for j in range(k):
            fmap = fmap + jnp.einsum('ble,oe->bol', emb[:, j:j + L_out, :], w[:, :, j])
        n_pool = (L_out - k) // k + 1
        win = fmap[:, :, : n_pool * k].reshape(B, KERNEL_NUM, n_pool, k)
        pools.append(jnp.max(win, axis=3))                       # (B, K, n_pool)
    cat = jnp.concatenate(pools, axis=-1).reshape(B, -1)         # (B, 2200)
    logits = cat @ wl.T + bl
    return jax.nn.log_softmax(logits, axis=1)


# ------------------------------ params / main -------------------------------
def init_params(key):
    keys = jax.random.split(key, 10)
    emb_table = 0.1 * jax.random.normal(keys[0], (VOCAB_SIZE, EMBED_SIZE), jnp.float32)
    emb_table = emb_table.at[0].set(0.0)                         # padding_idx=0
    conv_ws, conv_bs = [], []
    for i, k in enumerate(KERNEL_SIZES):
        conv_ws.append(0.05 * jax.random.normal(keys[1 + i],
                                                (KERNEL_NUM, EMBED_SIZE, k), jnp.float32))
        conv_bs.append(0.05 * jax.random.normal(keys[4 + i], (KERNEL_NUM,), jnp.float32))
    wl = 0.02 * jax.random.normal(keys[7], (C_SIZE, LINEAR_IN), jnp.float32)
    bl = 0.02 * jax.random.normal(keys[8], (C_SIZE,), jnp.float32)
    return emb_table, conv_ws, conv_bs, wl, bl


if __name__ == "__main__":
    key = jax.random.PRNGKey(0)
    pkey, xkey = jax.random.split(key)
    emb_table, conv_ws, conv_bs, wl, bl = init_params(pkey)
    x = jax.random.randint(xkey, (BATCH, SEQ_LEN), 0, VOCAB_SIZE, dtype=jnp.int32)

    # One-time packing (hoisted out of the per-call path).
    packed = prepare_params(emb_table, conv_ws, conv_bs, wl, bl)
    packed = jax.tree_util.tree_map(jax.block_until_ready, packed)

    out = discriminator_forward(x, *packed)
    jax.block_until_ready(out)
    assert out.shape == (BATCH, C_SIZE)

    ref = reference_forward(x, emb_table, conv_ws, conv_bs, wl, bl)
    assert jnp.allclose(out, ref, rtol=2e-2, atol=2e-2), (out, ref)

    print("KERNEL_OK")
</pallas_src>

<mosaic_0001>
module attributes {stable_mosaic.version = 11 : i64} {
  func.func @discriminator_kernel(%arg0: memref<320x384xbf16, #tpu.memory_space<vmem>>, %arg1: memref<384x128xbf16, #tpu.memory_space<vmem>>, %arg2: memref<4096x8xbf16, #tpu.memory_space<vmem>>, %arg3: memref<1x8xf32, #tpu.memory_space<vmem>>, %arg4: memref<2x8xf32, #tpu.memory_space<vmem>>) attributes {dimension_semantics = [], scalar_prefetch = 0 : i64, scratch_operands = 0 : i64, tpu.core_type = #tpu.core_type<tc>} {
    %c0 = arith.constant 0 : index
    %c0_0 = arith.constant 0 : index
    %0 = vector.load %arg0[%c0, %c0_0] : memref<320x384xbf16, #tpu.memory_space<vmem>>, vector<320x384xbf16>
    %c0_1 = arith.constant 0 : index
    %c0_2 = arith.constant 0 : index
    %1 = vector.load %arg1[%c0_1, %c0_2] : memref<384x128xbf16, #tpu.memory_space<vmem>>, vector<384x128xbf16>
    %cst = arith.constant dense<0.000000e+00> : vector<320x128xf32>
    %2 = tpu.matmul %0, %1, %cst {dimension_numbers = #tpu.dot_dimension_numbers<[1], [0], [0], [1], [0, 0, 1, 1], [], []>} : vector<320x384xbf16>, vector<384x128xbf16>, vector<320x128xf32> -> vector<320x128xf32>
    %3 = vector.extract_strided_slice %2 {offsets = [0, 0], sizes = [32, 128], strides = [1, 1]} : vector<320x128xf32> to vector<32x128xf32>
    %4 = vector.extract_strided_slice %2 {offsets = [32, 0], sizes = [32, 128], strides = [1, 1]} : vector<320x128xf32> to vector<32x128xf32>
    %5 = arith.maximumf %3, %4 : vector<32x128xf32>
    %6 = vector.extract_strided_slice %2 {offsets = [64, 0], sizes = [32, 128], strides = [1, 1]} : vector<320x128xf32> to vector<32x128xf32>
    %7 = arith.maximumf %5, %6 : vector<32x128xf32>
    %8 = vector.extract_strided_slice %2 {offsets = [96, 0], sizes = [32, 128], strides = [1, 1]} : vector<320x128xf32> to vector<32x128xf32>
    %9 = arith.maximumf %7, %8 : vector<32x128xf32>
    %10 = vector.extract_strided_slice %2 {offsets = [128, 0], sizes = [32, 128], strides = [1, 1]} : vector<320x128xf32> to vector<32x128xf32>
    %11 = arith.maximumf %9, %10 : vector<32x128xf32>
    %12 = arith.truncf %11 : vector<32x128xf32> to vector<32x128xbf16>
    %13 = vector.extract_strided_slice %12 {offsets = [0, 0], sizes = [16, 128], strides = [1, 1]} : vector<32x128xbf16> to vector<16x128xbf16>
    %14 = vector.extract_strided_slice %12 {offsets = [16, 0], sizes = [16, 128], strides = [1, 1]} : vector<32x128xbf16> to vector<16x128xbf16>
    %15 = tpu.concatenate %13, %14 in 1 : vector<16x128xbf16>, vector<16x128xbf16> -> vector<16x256xbf16>
    %16 = vector.extract_strided_slice %15 {offsets = [0, 0], sizes = [8, 256], strides = [1, 1]} : vector<16x256xbf16> to vector<8x256xbf16>
    %17 = vector.extract_strided_slice %15 {offsets = [8, 0], sizes = [8, 256], strides = [1, 1]} : vector<16x256xbf16> to vector<8x256xbf16>
    %18 = tpu.concatenate %16, %17 in 1 : vector<8x256xbf16>, vector<8x256xbf16> -> vector<8x512xbf16>
    %19 = vector.extract_strided_slice %18 {offsets = [0, 0], sizes = [4, 512], strides = [1, 1]} : vector<8x512xbf16> to vector<4x512xbf16>
    %20 = vector.extract_strided_slice %18 {offsets = [4, 0], sizes = [4, 512], strides = [1, 1]} : vector<8x512xbf16> to vector<4x512xbf16>
    %21 = tpu.concatenate %19, %20 in 1 : vector<4x512xbf16>, vector<4x512xbf16> -> vector<4x1024xbf16>
    %22 = vector.extract_strided_slice %21 {offsets = [0, 0], sizes = [2, 1024], strides = [1, 1]} : vector<4x1024xbf16> to vector<2x1024xbf16>
    %23 = vector.extract_strided_slice %21 {offsets = [2, 0], sizes = [2, 1024], strides = [1, 1]} : vector<4x1024xbf16> to vector<2x1024xbf16>
    %24 = tpu.concatenate %22, %23 in 1 : vector<2x1024xbf16>, vector<2x1024xbf16> -> vector<2x2048xbf16>
    %25 = vector.extract_strided_slice %24 {offsets = [0, 0], sizes = [1, 2048], strides = [1, 1]} : vector<2x2048xbf16> to vector<1x2048xbf16>
    %26 = vector.extract_strided_slice %24 {offsets = [1, 0], sizes = [1, 2048], strides = [1, 1]} : vector<2x2048xbf16> to vector<1x2048xbf16>
    %27 = tpu.concatenate %25, %26 in 1 : vector<1x2048xbf16>, vector<1x2048xbf16> -> vector<1x4096xbf16>
    %28 = vector.extract_strided_slice %2 {offsets = [160, 0], sizes = [32, 128], strides = [1, 1]} : vector<320x128xf32> to vector<32x128xf32>
    %29 = vector.extract_strided_slice %2 {offsets = [192, 0], sizes = [32, 128], strides = [1, 1]} : vector<320x128xf32> to vector<32x128xf32>
    %30 = arith.maximumf %28, %29 : vector<32x128xf32>
    %31 = vector.extract_strided_slice %2 {offsets = [224, 0], sizes = [32, 128], strides = [1, 1]} : vector<320x128xf32> to vector<32x128xf32>
    %32 = arith.maximumf %30, %31 : vector<32x128xf32>
    %33 = vector.extract_strided_slice %2 {offsets = [256, 0], sizes = [32, 128], strides = [1, 1]} : vector<320x128xf32> to vector<32x128xf32>
    %34 = arith.maximumf %32, %33 : vector<32x128xf32>
    %35 = vector.extract_strided_slice %2 {offsets = [288, 0], sizes = [32, 128], strides = [1, 1]} : vector<320x128xf32> to vector<32x128xf32>
    %36 = arith.maximumf %34, %35 : vector<32x128xf32>
    %37 = arith.truncf %36 : vector<32x128xf32> to vector<32x128xbf16>
    %38 = vector.extract_strided_slice %37 {offsets = [0, 0], sizes = [16, 128], strides = [1, 1]} : vector<32x128xbf16> to vector<16x128xbf16>
    %39 = vector.extract_strided_slice %37 {offsets = [16, 0], sizes = [16, 128], strides = [1, 1]} : vector<32x128xbf16> to vector<16x128xbf16>
    %40 = tpu.concatenate %38, %39 in 1 : vector<16x128xbf16>, vector<16x128xbf16> -> vector<16x256xbf16>
    %41 = vector.extract_strided_slice %40 {offsets = [0, 0], sizes = [8, 256], strides = [1, 1]} : vector<16x256xbf16> to vector<8x256xbf16>
    %42 = vector.extract_strided_slice %40 {offsets = [8, 0], sizes = [8, 256], strides = [1, 1]} : vector<16x256xbf16> to vector<8x256xbf16>
    %43 = tpu.concatenate %41, %42 in 1 : vector<8x256xbf16>, vector<8x256xbf16> -> vector<8x512xbf16>
    %44 = vector.extract_strided_slice %43 {offsets = [0, 0], sizes = [4, 512], strides = [1, 1]} : vector<8x512xbf16> to vector<4x512xbf16>
    %45 = vector.extract_strided_slice %43 {offsets = [4, 0], sizes = [4, 512], strides = [1, 1]} : vector<8x512xbf16> to vector<4x512xbf16>
    %46 = tpu.concatenate %44, %45 in 1 : vector<4x512xbf16>, vector<4x512xbf16> -> vector<4x1024xbf16>
    %47 = vector.extract_strided_slice %46 {offsets = [0, 0], sizes = [2, 1024], strides = [1, 1]} : vector<4x1024xbf16> to vector<2x1024xbf16>
    %48 = vector.extract_strided_slice %46 {offsets = [2, 0], sizes = [2, 1024], strides = [1, 1]} : vector<4x1024xbf16> to vector<2x1024xbf16>
    %49 = tpu.concatenate %47, %48 in 1 : vector<2x1024xbf16>, vector<2x1024xbf16> -> vector<2x2048xbf16>
    %50 = vector.extract_strided_slice %49 {offsets = [0, 0], sizes = [1, 2048], strides = [1, 1]} : vector<2x2048xbf16> to vector<1x2048xbf16>
    %51 = vector.extract_strided_slice %49 {offsets = [1, 0], sizes = [1, 2048], strides = [1, 1]} : vector<2x2048xbf16> to vector<1x2048xbf16>
    %52 = tpu.concatenate %50, %51 in 1 : vector<1x2048xbf16>, vector<1x2048xbf16> -> vector<1x4096xbf16>
    %53 = tpu.concatenate %27, %52 in 0 : vector<1x4096xbf16>, vector<1x4096xbf16> -> vector<2x4096xbf16>
    %c0_3 = arith.constant 0 : index
    %c0_4 = arith.constant 0 : index
    %54 = vector.load %arg2[%c0_3, %c0_4] : memref<4096x8xbf16, #tpu.memory_space<vmem>>, vector<4096x8xbf16>
    %cst_5 = arith.constant dense<0.000000e+00> : vector<2x8xf32>
    %55 = tpu.matmul %53, %54, %cst_5 {dimension_numbers = #tpu.dot_dimension_numbers<[1], [0], [0], [1], [0, 0, 1, 1], [], []>} : vector<2x4096xbf16>, vector<4096x8xbf16>, vector<2x8xf32> -> vector<2x8xf32>
    %c0_6 = arith.constant 0 : index
    %c0_7 = arith.constant 0 : index
    %56 = vector.load %arg3[%c0_6, %c0_7] : memref<1x8xf32, #tpu.memory_space<vmem>>, vector<1x8xf32>
    %57 = vector.broadcast %56 : vector<1x8xf32> to vector<2x8xf32>
    %58 = arith.addf %55, %57 : vector<2x8xf32>
    %cst_8 = arith.constant dense<0xFF800000> : vector<2xf32>
    %59 = vector.multi_reduction <maximumf>, %58, %cst_8 [1] : vector<2x8xf32> to vector<2xf32>
    %60 = vector.shape_cast %59 : vector<2xf32> to vector<2x1xf32>
    %61 = vector.broadcast %60 : vector<2x1xf32> to vector<2x8xf32>
    %62 = arith.subf %58, %61 : vector<2x8xf32>
    %63 = math.exp %62 : vector<2x8xf32>
    %cst_9 = arith.constant dense<0.000000e+00> : vector<2xf32>
    %64 = vector.multi_reduction <add>, %63, %cst_9 [1] : vector<2x8xf32> to vector<2xf32>
    %65 = vector.shape_cast %64 : vector<2xf32> to vector<2x1xf32>
    %66 = math.log %65 : vector<2x1xf32>
    %67 = vector.broadcast %66 : vector<2x1xf32> to vector<2x8xf32>
    %68 = arith.subf %62, %67 : vector<2x8xf32>
    %c0_10 = arith.constant 0 : index
    %c0_11 = arith.constant 0 : index
    %69 = vector.load %arg4[%c0_10, %c0_11] : memref<2x8xf32, #tpu.memory_space<vmem>>, vector<2x8xf32>
    tpu.vector_store %arg4[%c0_10, %c0_11], %68 {strides = array<i32>} : memref<2x8xf32, #tpu.memory_space<vmem>>, vector<2x8xf32>,
    return
  }
}

</mosaic_0001>

<llo_original>
// kernel: discriminator_forward.1
$region0: #{discriminator_forward.1}
  #allocation0 [shape = 'u32[]', space=smem, size = 0x4, offset = 0x4, fixed_abs, tag = 'smem constant byte address 0x4 - core index']
  #allocation1 [shape = 'u32[72,128]{1,0:T(1,128)}', space=vmem, size = 0x9000, scoped, tag = 'internal scratch']
  %s0 = inlined_call_operand.vmem [shape: bf16[320,384], index: 0, kind: input, shape index: {}]
  %s1 = inlined_call_operand.vmem [shape: bf16[384,128], index: 1, kind: input, shape index: {}]
  %s2 = inlined_call_operand.vmem [shape: bf16[4096,8], index: 2, kind: input, shape index: {}]
  %s3 = inlined_call_operand.vmem [shape: f32[1,8], index: 3, kind: input, shape index: {}]
  %s4 = inlined_call_operand.hbm [shape: f32[2,8], index: 4, kind: output, shape index: {}]
  %s5 = sld [smem:[#allocation0]]
  $region26: #{discriminator_forward.1} parent=0
    _
  %s7 = ssub.s32 1, %s5
  %s8 = scalar_select 0, %s7, %s5
  $region1: #{discriminator_forward.1} parent=0
    #allocation2 [shape = 'u8[1024]{0}', space=vmem, size = 0x400, scoped, tag = 'output window, operand 0, single buffered']
    #allocation3 [shape = 's32[1]{0}', space=sflag, size = 0x4, scoped, tag = 'scoped memory for discriminator_forward.1']
    %9 = vsyncpa [#allocation3], 0
    // Predicated region
    $region2: #{discriminator_forward.1} parent=1 // pred_check
      _
    $region3: #{discriminator_forward.1} parent=1 // pred_check_branch
      %11 = sbr.rel (0) target = $region5
    $region4: #{discriminator_forward.1} parent=1 // pred_region
      _
    $region5: #{discriminator_forward.1} parent=1 // pred_fallthru
      _
    // Predicated region
    $region6: #{discriminator_forward.1} parent=1 // pred_check
      _
    $region7: #{discriminator_forward.1} parent=1 // pred_check_branch
      %13 = sbr.rel (0) target = $region9
    $region8: #{discriminator_forward.1} parent=1 // pred_region
      _
    $region9: #{discriminator_forward.1} parent=1 // pred_fallthru
      _
    // Predicated region
    $region10: #{discriminator_forward.1} parent=1 // pred_check
      _
    $region11: #{discriminator_forward.1} parent=1 // pred_check_branch
      %15 = sbr.rel (0) target = $region13
    $region12: #{discriminator_forward.1} parent=1 // pred_region
      _
    $region13: #{discriminator_forward.1} parent=1 // pred_fallthru
      _
    // Predicated region
    $region14: #{discriminator_forward.1} parent=1 // pred_check
      _
    $region15: #{discriminator_forward.1} parent=1 // pred_check_branch
      %17 = sbr.rel (0) target = $region17
    $region16: #{discriminator_forward.1} parent=1 // pred_region
      _
    $region17: #{discriminator_forward.1} parent=1 // pred_fallthru
      _
    %v18 = vld [vmem:[%s0] sm:$0xff]
    %v19 = vld [vmem:[%s0 + $0x8] sm:$0xf]
    %v20 = vld [vmem:[%s0 + $0xc] sm:$0xff]
    %v21 = vld [vmem:[%s0 + $0x14] sm:$0xf]
    %v22 = vld [vmem:[%s0 + $0x18] sm:$0xff]
    %v23 = vld [vmem:[%s0 + $0x20] sm:$0xf]
    %v24 = vld [vmem:[%s0 + $0x24] sm:$0xff]
    %v25 = vld [vmem:[%s0 + $0x2c] sm:$0xf]
    %v26 = vld [vmem:[%s0 + $0x30] sm:$0xff]
    %v27 = vld [vmem:[%s0 + $0x38] sm:$0xf]
    %v28 = vld [vmem:[%s0 + $0x3c] sm:$0xff]
    %v29 = vld [vmem:[%s0 + $0x44] sm:$0xf]
    %v30 = vld [vmem:[%s0 + $0x48] sm:$0xff]
    %v31 = vld [vmem:[%s0 + $0x50] sm:$0xf]
    %v32 = vld [vmem:[%s0 + $0x54] sm:$0xff]
    %v33 = vld [vmem:[%s0 + $0x5c] sm:$0xf]
    %v34 = vld [vmem:[%s0 + $0x60] sm:$0xff]
    %v35 = vld [vmem:[%s0 + $0x68] sm:$0xf]
    %v36 = vld [vmem:[%s0 + $0x6c] sm:$0xff]
    %v37 = vld [vmem:[%s0 + $0x74] sm:$0xf]
    %v38 = vld [vmem:[%s0 + $0x78] sm:$0xff]
    %v39 = vld [vmem:[%s0 + $0x80] sm:$0xf]
    %v40 = vld [vmem:[%s0 + $0x84] sm:$0xff]
    %v41 = vld [vmem:[%s0 + $0x8c] sm:$0xf]
    %v42 = vld [vmem:[%s0 + $0x90] sm:$0xff]
    %v43 = vld [vmem:[%s0 + $0x98] sm:$0xf]
    %v44 = vld [vmem:[%s0 + $0x9c] sm:$0xff]
    %v45 = vld [vmem:[%s0 + $0xa4] sm:$0xf]
    %v46 = vld [vmem:[%s0 + $0xa8] sm:$0xff]
    %v47 = vld [vmem:[%s0 + $0xb0] sm:$0xf]
    %v48 = vld [vmem:[%s0 + $0xb4] sm:$0xff]
    %v49 = vld [vmem:[%s0 + $0xbc] sm:$0xf]
    %v50 = vld [vmem:[%s0 + $0xc0] sm:$0xff]
    %v51 = vld [vmem:[%s0 + $0xc8] sm:$0xf]
    %v52 = vld [vmem:[%s0 + $0xcc] sm:$0xff]
    %v53 = vld [vmem:[%s0 + $0xd4] sm:$0xf]
    %v54 = vld [vmem:[%s0 + $0xd8] sm:$0xff]
    %v55 = vld [vmem:[%s0 + $0xe0] sm:$0xf]
    %v56 = vld [vmem:[%s0 + $0xe4] sm:$0xff]
    %v57 = vld [vmem:[%s0 + $0xec] sm:$0xf]
    %v58 = vld [vmem:[%s0 + $0xf0] sm:$0xff]
    %v59 = vld [vmem:[%s0 + $0xf8] sm:$0xf]
    %v60 = vld [vmem:[%s0 + $0xfc] sm:$0xff]
    %v61 = vld [vmem:[%s0 + $0x104] sm:$0xf]
    %v62 = vld [vmem:[%s0 + $0x108] sm:$0xff]
    %v63 = vld [vmem:[%s0 + $0x110] sm:$0xf]
    %v64 = vld [vmem:[%s0 + $0x114] sm:$0xff]
    %v65 = vld [vmem:[%s0 + $0x11c] sm:$0xf]
    %v66 = vld [vmem:[%s0 + $0x120] sm:$0xff]
    %v67 = vld [vmem:[%s0 + $0x128] sm:$0xf]
    %v68 = vld [vmem:[%s0 + $0x12c] sm:$0xff]
    %v69 = vld [vmem:[%s0 + $0x134] sm:$0xf]
    %v70 = vld [vmem:[%s0 + $0x138] sm:$0xff]
    %v71 = vld [vmem:[%s0 + $0x140] sm:$0xf]
    %v72 = vld [vmem:[%s0 + $0x144] sm:$0xff]
    %v73 = vld [vmem:[%s0 + $0x14c] sm:$0xf]
    %v74 = vld [vmem:[%s0 + $0x150] sm:$0xff]
    %v75 = vld [vmem:[%s0 + $0x158] sm:$0xf]
    %v76 = vld [vmem:[%s0 + $0x15c] sm:$0xff]
    %v77 = vld [vmem:[%s0 + $0x164] sm:$0xf]
    %v78 = vld [vmem:[%s0 + $0x168] sm:$0xff]
    %v79 = vld [vmem:[%s0 + $0x170] sm:$0xf]
    %v80 = vld [vmem:[%s0 + $0x174] sm:$0xff]
    %v81 = vld [vmem:[%s0 + $0x17c] sm:$0xf]
    %v82 = vld [vmem:[%s0 + $0x180] sm:$0xff]
    %v83 = vld [vmem:[%s0 + $0x188] sm:$0xf]
    %v84 = vld [vmem:[%s0 + $0x18c] sm:$0xff]
    %v85 = vld [vmem:[%s0 + $0x194] sm:$0xf]
    %v86 = vld [vmem:[%s0 + $0x198] sm:$0xff]
    %v87 = vld [vmem:[%s0 + $0x1a0] sm:$0xf]
    %v88 = vld [vmem:[%s0 + $0x1a4] sm:$0xff]
    %v89 = vld [vmem:[%s0 + $0x1ac] sm:$0xf]
    %v90 = vld [vmem:[%s0 + $0x1b0] sm:$0xff]
    %v91 = vld [vmem:[%s0 + $0x1b8] sm:$0xf]
    %v92 = vld [vmem:[%s0 + $0x1bc] sm:$0xff]
    %v93 = vld [vmem:[%s0 + $0x1c4] sm:$0xf]
    %v94 = vld [vmem:[%s0 + $0x1c8] sm:$0xff]
    %v95 = vld [vmem:[%s0 + $0x1d0] sm:$0xf]
    %v96 = vld [vmem:[%s0 + $0x1d4] sm:$0xff]
    %v97 = vld [vmem:[%s0 + $0x1dc] sm:$0xf]
    %v98 = vld [vmem:[%s1] sm:$0xf]
    %v99 = vld [vmem:[%s1 + $0x4] sm:$0xf]
    %v100 = vld [vmem:[%s1 + $0x8] sm:$0xf]
    %v101 = vld [vmem:[%s1 + $0xc] sm:$0xf]
    %v102 = vld [vmem:[%s1 + $0x10] sm:$0xf]
    %v103 = vld [vmem:[%s1 + $0x14] sm:$0xf]
    %v104 = vld [vmem:[%s1 + $0x18] sm:$0xf]
    %v105 = vld [vmem:[%s1 + $0x1c] sm:$0xf]
    %v106 = vld [vmem:[%s1 + $0x20] sm:$0xf]
    %v107 = vld [vmem:[%s1 + $0x24] sm:$0xf]
    %v108 = vld [vmem:[%s1 + $0x28] sm:$0xf]
    %v109 = vld [vmem:[%s1 + $0x2c] sm:$0xf]
    %v110 = vld [vmem:[%s1 + $0x30] sm:$0xf]
    %v111 = vld [vmem:[%s1 + $0x34] sm:$0xf]
    %v112 = vld [vmem:[%s1 + $0x38] sm:$0xf]
    %v113 = vld [vmem:[%s1 + $0x3c] sm:$0xf]
    %v114 = vld [vmem:[%s1 + $0x40] sm:$0xf]
    %v115 = vld [vmem:[%s1 + $0x44] sm:$0xf]
    %v116 = vld [vmem:[%s1 + $0x48] sm:$0xf]
    %v117 = vld [vmem:[%s1 + $0x4c] sm:$0xf]
    %v118 = vld [vmem:[%s1 + $0x50] sm:$0xf]
    %v119 = vld [vmem:[%s1 + $0x54] sm:$0xf]
    %v120 = vld [vmem:[%s1 + $0x58] sm:$0xf]
    %v121 = vld [vmem:[%s1 + $0x5c] sm:$0xf]
    %v122 = vld [vmem:[%s1 + $0x60] sm:$0xf]
    %v123 = vld [vmem:[%s1 + $0x64] sm:$0xf]
    %v124 = vld [vmem:[%s1 + $0x68] sm:$0xf]
    %v125 = vld [vmem:[%s1 + $0x6c] sm:$0xf]
    %v126 = vld [vmem:[%s1 + $0x70] sm:$0xf]
    %v127 = vld [vmem:[%s1 + $0x74] sm:$0xf]
    %v128 = vld [vmem:[%s1 + $0x78] sm:$0xf]
    %v129 = vld [vmem:[%s1 + $0x7c] sm:$0xf]
    %v130 = vld [vmem:[%s1 + $0x80] sm:$0xf]
    %v131 = vld [vmem:[%s1 + $0x84] sm:$0xf]
    %v132 = vld [vmem:[%s1 + $0x88] sm:$0xf]
    %v133 = vld [vmem:[%s1 + $0x8c] sm:$0xf]
    %v134 = vld [vmem:[%s1 + $0x90] sm:$0xf]
    %v135 = vld [vmem:[%s1 + $0x94] sm:$0xf]
    %v136 = vld [vmem:[%s1 + $0x98] sm:$0xf]
    %v137 = vld [vmem:[%s1 + $0x9c] sm:$0xf]
    %v138 = vld [vmem:[%s1 + $0xa0] sm:$0xf]
    %v139 = vld [vmem:[%s1 + $0xa4] sm:$0xf]
    %v140 = vld [vmem:[%s1 + $0xa8] sm:$0xf]
    %v141 = vld [vmem:[%s1 + $0xac] sm:$0xf]
    %v142 = vld [vmem:[%s1 + $0xb0] sm:$0xf]
    %v143 = vld [vmem:[%s1 + $0xb4] sm:$0xf]
    %v144 = vld [vmem:[%s1 + $0xb8] sm:$0xf]
    %v145 = vld [vmem:[%s1 + $0xbc] sm:$0xf]
    %v226 = vunpack.c.l.b16 %v18
    %v227 = vunpack.c.h.b16 %v18
    %v228 = vunpack.c.l.b16 %v19
    %v229 = vunpack.c.l.b16 %v20
    %v230 = vunpack.c.h.b16 %v20
    %v231 = vunpack.c.l.b16 %v21
    %v232 = vunpack.c.l.b16 %v22
    %v233 = vunpack.c.h.b16 %v22
    %v234 = vunpack.c.l.b16 %v23
    %v235 = vunpack.c.l.b16 %v24
    %v236 = vunpack.c.h.b16 %v24
    %v237 = vunpack.c.l.b16 %v25
    %v238 = vunpack.c.l.b16 %v26
    %v239 = vunpack.c.h.b16 %v26
    %v240 = vunpack.c.l.b16 %v27
    %v241 = vunpack.c.l.b16 %v28
    %v242 = vunpack.c.h.b16 %v28
    %v243 = vunpack.c.l.b16 %v29
    %v244 = vunpack.c.l.b16 %v30
    %v245 = vunpack.c.h.b16 %v30
    %v246 = vunpack.c.l.b16 %v31
    %v247 = vunpack.c.l.b16 %v32
    %v248 = vunpack.c.h.b16 %v32
    %v249 = vunpack.c.l.b16 %v33
    %v250 = vunpack.c.l.b16 %v34
    %v251 = vunpack.c.h.b16 %v34
    %v252 = vunpack.c.l.b16 %v35
    %v253 = vunpack.c.l.b16 %v36
    %v254 = vunpack.c.h.b16 %v36
    %v255 = vunpack.c.l.b16 %v37
    %v256 = vunpack.c.l.b16 %v38
    %v257 = vunpack.c.h.b16 %v38
    %v258 = vunpack.c.l.b16 %v39
    %v259 = vunpack.c.l.b16 %v40
    %v260 = vunpack.c.h.b16 %v40
    %v261 = vunpack.c.l.b16 %v41
    %v262 = vunpack.c.l.b16 %v42
    %v263 = vunpack.c.h.b16 %v42
    %v264 = vunpack.c.l.b16 %v43
    %v265 = vunpack.c.l.b16 %v44
    %v266 = vunpack.c.h.b16 %v44
    %v267 = vunpack.c.l.b16 %v45
    %v268 = vunpack.c.l.b16 %v46
    %v269 = vunpack.c.h.b16 %v46
    %v270 = vunpack.c.l.b16 %v47
    %v271 = vunpack.c.l.b16 %v48
    %v272 = vunpack.c.h.b16 %v48
    %v273 = vunpack.c.l.b16 %v49
    %v274 = vunpack.c.l.b16 %v50
    %v275 = vunpack.c.h.b16 %v50
    %v276 = vunpack.c.l.b16 %v51
    %v277 = vunpack.c.l.b16 %v52
    %v278 = vunpack.c.h.b16 %v52
    %v279 = vunpack.c.l.b16 %v53
    %v280 = vunpack.c.l.b16 %v54
    %v281 = vunpack.c.h.b16 %v54
    %v282 = vunpack.c.l.b16 %v55
    %v283 = vunpack.c.l.b16 %v56
    %v284 = vunpack.c.h.b16 %v56
    %v285 = vunpack.c.l.b16 %v57
    %v286 = vunpack.c.l.b16 %v58
    %v287 = vunpack.c.h.b16 %v58
    %v288 = vunpack.c.l.b16 %v59
    %v289 = vunpack.c.l.b16 %v60
    %v290 = vunpack.c.h.b16 %v60
    %v291 = vunpack.c.l.b16 %v61
    %v292 = vunpack.c.l.b16 %v62
    %v293 = vunpack.c.h.b16 %v62
    %v294 = vunpack.c.l.b16 %v63
    %v295 = vunpack.c.l.b16 %v64
    %v296 = vunpack.c.h.b16 %v64
    %v297 = vunpack.c.l.b16 %v65
    %v298 = vunpack.c.l.b16 %v66
    %v299 = vunpack.c.h.b16 %v66
    %v300 = vunpack.c.l.b16 %v67
    %v301 = vunpack.c.l.b16 %v68
    %v302 = vunpack.c.h.b16 %v68
    %v303 = vunpack.c.l.b16 %v69
    %v304 = vunpack.c.l.b16 %v70
    %v305 = vunpack.c.h.b16 %v70
    %v306 = vunpack.c.l.b16 %v71
    %v307 = vunpack.c.l.b16 %v72
    %v308 = vunpack.c.h.b16 %v72
    %v309 = vunpack.c.l.b16 %v73
    %v310 = vunpack.c.l.b16 %v74
    %v311 = vunpack.c.h.b16 %v74
    %v312 = vunpack.c.l.b16 %v75
    %v313 = vunpack.c.l.b16 %v76
    %v314 = vunpack.c.h.b16 %v76
    %v315 = vunpack.c.l.b16 %v77
    %v316 = vunpack.c.l.b16 %v78
    %v317 = vunpack.c.h.b16 %v78
    %v318 = vunpack.c.l.b16 %v79
    %v319 = vunpack.c.l.b16 %v80
    %v320 = vunpack.c.h.b16 %v80
    %v321 = vunpack.c.l.b16 %v81
    %v322 = vunpack.c.l.b16 %v82
    %v323 = vunpack.c.h.b16 %v82
    %v324 = vunpack.c.l.b16 %v83
    %v325 = vunpack.c.l.b16 %v84
    %v326 = vunpack.c.h.b16 %v84
    %v327 = vunpack.c.l.b16 %v85
    %v328 = vunpack.c.l.b16 %v86
    %v329 = vunpack.c.h.b16 %v86
    %v330 = vunpack.c.l.b16 %v87
    %v331 = vunpack.c.l.b16 %v88
    %v332 = vunpack.c.h.b16 %v88
    %v333 = vunpack.c.l.b16 %v89
    %v334 = vunpack.c.l.b16 %v90
    %v335 = vunpack.c.h.b16 %v90
    %v336 = vunpack.c.l.b16 %v91
    %v337 = vunpack.c.l.b16 %v92
    %v338 = vunpack.c.h.b16 %v92
    %v339 = vunpack.c.l.b16 %v93
    %v340 = vunpack.c.l.b16 %v94
    %v341 = vunpack.c.h.b16 %v94
    %v342 = vunpack.c.l.b16 %v95
    %v343 = vunpack.c.l.b16 %v96
    %v344 = vunpack.c.h.b16 %v96
    %v345 = vunpack.c.l.b16 %v97
    %v346 = vpack.c.b16 %v229, %v226
    %v347 = vpack.c.b16 %v230, %v227
    %v348 = vpack.c.b16 %v231, %v228
    %v349 = vpack.c.b16 %v235, %v232
    %v350 = vpack.c.b16 %v236, %v233
    %v351 = vpack.c.b16 %v237, %v234
    %v352 = vpack.c.b16 %v241, %v238
    %v353 = vpack.c.b16 %v242, %v239
    %v354 = vpack.c.b16 %v243, %v240
    %v355 = vpack.c.b16 %v247, %v244
    %v356 = vpack.c.b16 %v248, %v245
    %v357 = vpack.c.b16 %v249, %v246
    %v358 = vpack.c.b16 %v253, %v250
    %v359 = vpack.c.b16 %v254, %v251
    %v360 = vpack.c.b16 %v255, %v252
    %v361 = vpack.c.b16 %v259, %v256
    %v362 = vpack.c.b16 %v260, %v257
    %v363 = vpack.c.b16 %v261, %v258
    %v364 = vpack.c.b16 %v265, %v262
    %v365 = vpack.c.b16 %v266, %v263
    %v366 = vpack.c.b16 %v267, %v264
    %v367 = vpack.c.b16 %v271, %v268
    %v368 = vpack.c.b16 %v272, %v269
    %v369 = vpack.c.b16 %v273, %v270
    %v370 = vpack.c.b16 %v277, %v274
    %v371 = vpack.c.b16 %v278, %v275
    %v372 = vpack.c.b16 %v279, %v276
    %v373 = vpack.c.b16 %v283, %v280
    %v374 = vpack.c.b16 %v284, %v281
    %v375 = vpack.c.b16 %v285, %v282
    %v376 = vpack.c.b16 %v289, %v286
    %v377 = vpack.c.b16 %v290, %v287
    %v378 = vpack.c.b16 %v291, %v288
    %v379 = vpack.c.b16 %v295, %v292
    %v380 = vpack.c.b16 %v296, %v293
    %v381 = vpack.c.b16 %v297, %v294
    %v382 = vpack.c.b16 %v301, %v298
    %v383 = vpack.c.b16 %v302, %v299
    %v384 = vpack.c.b16 %v303, %v300
    %v385 = vpack.c.b16 %v307, %v304
    %v386 = vpack.c.b16 %v308, %v305
    %v387 = vpack.c.b16 %v309, %v306
    %v388 = vpack.c.b16 %v313, %v310
    %v389 = vpack.c.b16 %v314, %v311
    %v390 = vpack.c.b16 %v315, %v312
    %v391 = vpack.c.b16 %v319, %v316
    %v392 = vpack.c.b16 %v320, %v317
    %v393 = vpack.c.b16 %v321, %v318
    %v394 = vpack.c.b16 %v325, %v322
    %v395 = vpack.c.b16 %v326, %v323
    %v396 = vpack.c.b16 %v327, %v324
    %v397 = vpack.c.b16 %v331, %v328
    %v398 = vpack.c.b16 %v332, %v329
    %v399 = vpack.c.b16 %v333, %v330
    %v400 = vpack.c.b16 %v337, %v334
    %v401 = vpack.c.b16 %v338, %v335
    %v402 = vpack.c.b16 %v339, %v336
    %v403 = vpack.c.b16 %v343, %v340
    %v404 = vpack.c.b16 %v344, %v341
    %v405 = vpack.c.b16 %v345, %v342
    %v514 = vunpack.c.l.b16 %v98
    %v515 = vunpack.c.l.b16 %v99
    %v516 = vunpack.c.l.b16 %v100
    %v517 = vunpack.c.l.b16 %v101
    %v518 = vunpack.c.l.b16 %v102
    %v519 = vunpack.c.l.b16 %v103
    %v520 = vunpack.c.l.b16 %v104
    %v521 = vunpack.c.l.b16 %v105
    %v522 = vunpack.c.l.b16 %v106
    %v523 = vunpack.c.l.b16 %v107
    %v524 = vunpack.c.l.b16 %v108
    %v525 = vunpack.c.l.b16 %v109
    %v526 = vunpack.c.l.b16 %v110
    %v527 = vunpack.c.l.b16 %v111
    %v528 = vunpack.c.l.b16 %v112
    %v529 = vunpack.c.l.b16 %v113
    %v530 = vunpack.c.l.b16 %v114
    %v531 = vunpack.c.l.b16 %v115
    %v532 = vunpack.c.l.b16 %v116
    %v533 = vunpack.c.l.b16 %v117
    %v534 = vunpack.c.l.b16 %v118
    %v535 = vunpack.c.l.b16 %v119
    %v536 = vunpack.c.l.b16 %v120
    %v537 = vunpack.c.l.b16 %v121
    %v538 = vunpack.c.l.b16 %v122
    %v539 = vunpack.c.l.b16 %v123
    %v540 = vunpack.c.l.b16 %v124
    %v541 = vunpack.c.l.b16 %v125
    %v542 = vunpack.c.l.b16 %v126
    %v543 = vunpack.c.l.b16 %v127
    %v544 = vunpack.c.l.b16 %v128
    %v545 = vunpack.c.l.b16 %v129
    %v546 = vunpack.c.l.b16 %v130
    %v547 = vunpack.c.l.b16 %v131
    %v548 = vunpack.c.l.b16 %v132
    %v549 = vunpack.c.l.b16 %v133
    %v550 = vunpack.c.l.b16 %v134
    %v551 = vunpack.c.l.b16 %v135
    %v552 = vunpack.c.l.b16 %v136
    %v553 = vunpack.c.l.b16 %v137
    %v554 = vunpack.c.l.b16 %v138
    %v555 = vunpack.c.l.b16 %v139
    %v556 = vunpack.c.l.b16 %v140
    %v557 = vunpack.c.l.b16 %v141
    %v558 = vunpack.c.l.b16 %v142
    %v559 = vunpack.c.l.b16 %v143
    %v560 = vunpack.c.l.b16 %v144
    %v561 = vunpack.c.l.b16 %v145
    %v562 = vpack.c.b16 %v515, %v514
    %v563 = vpack.c.b16 %v517, %v516
    %v564 = vpack.c.b16 %v519, %v518
    %v565 = vpack.c.b16 %v521, %v520
    %v566 = vpack.c.b16 %v523, %v522
    %v567 = vpack.c.b16 %v525, %v524
    %v568 = vpack.c.b16 %v527, %v526
    %v569 = vpack.c.b16 %v529, %v528
    %v570 = vpack.c.b16 %v531, %v530
    %v571 = vpack.c.b16 %v533, %v532
    %v572 = vpack.c.b16 %v535, %v534
    %v573 = vpack.c.b16 %v537, %v536
    %v574 = vpack.c.b16 %v539, %v538
    %v575 = vpack.c.b16 %v541, %v540
    %v576 = vpack.c.b16 %v543, %v542
    %v577 = vpack.c.b16 %v545, %v544
    %v578 = vpack.c.b16 %v547, %v546
    %v579 = vpack.c.b16 %v549, %v548
    %v580 = vpack.c.b16 %v551, %v550
    %v581 = vpack.c.b16 %v553, %v552
    %v582 = vpack.c.b16 %v555, %v554
    %v583 = vpack.c.b16 %v557, %v556
    %v584 = vpack.c.b16 %v559, %v558
    %v585 = vpack.c.b16 %v561, %v560
    %610 = vmatpush.bf16.msra.mxu0 %v569
    %611 = vmatpush.bf16.msra.mxu0 %v568
    %612 = vmatpush.bf16.msra.mxu0 %v567
    %613 = vmatpush.bf16.msra.mxu0 %v566
    %614 = vmatpush.bf16.msra.mxu0 %v565
    %615 = vmatpush.bf16.msra.mxu0 %v564
    %616 = vmatpush.bf16.msra.mxu0 %v563
    %617 = vmatpush.bf16.msra.mxu0 %v562
    %618 = vmatmul.bf16.gmra.mxu0 %v346
    %v619 = vpop.f32.mrf.mxu0
    %v620 = vadd.f32 0.0, %v619
    %v621 = vpop.f32.mrf.mxu0
    %v622 = vadd.f32 0.0, %v621
    %623 = vmatmul.bf16.gmra.mxu0 %v349
    %v624 = vpop.f32.mrf.mxu0
    %v625 = vadd.f32 0.0, %v624
    %v626 = vpop.f32.mrf.mxu0
    %v627 = vadd.f32 0.0, %v626
    %628 = vmatmul.bf16.gmra.mxu0 %v352
    %v629 = vpop.f32.mrf.mxu0
    %v630 = vadd.f32 0.0, %v629
    %v631 = vpop.f32.mrf.mxu0
    %v632 = vadd.f32 0.0, %v631
    %633 = vmatmul.bf16.gmra.mxu0 %v355
    %v634 = vpop.f32.mrf.mxu0
    %v635 = vadd.f32 0.0, %v634
    %v636 = vpop.f32.mrf.mxu0
    %v637 = vadd.f32 0.0, %v636
    %638 = vmatmul.bf16.gmra.mxu0 %v358
    %v639 = vpop.f32.mrf.mxu0
    %v640 = vadd.f32 0.0, %v639
    %v641 = vpop.f32.mrf.mxu0
    %v642 = vadd.f32 0.0, %v641
    %643 = vmatmul.bf16.gmra.mxu0 %v361
    %v644 = vpop.f32.mrf.mxu0
    %v645 = vadd.f32 0.0, %v644
    %v646 = vpop.f32.mrf.mxu0
    %v647 = vadd.f32 0.0, %v646
    %648 = vmatmul.bf16.gmra.mxu0 %v364
    %v649 = vpop.f32.mrf.mxu0
    %v650 = vadd.f32 0.0, %v649
    %v651 = vpop.f32.mrf.mxu0
    %v652 = vadd.f32 0.0, %v651
    %653 = vmatmul.bf16.gmra.mxu0 %v367
    %v654 = vpop.f32.mrf.mxu0
    %v655 = vadd.f32 0.0, %v654
    %v656 = vpop.f32.mrf.mxu0
    %v657 = vadd.f32 0.0, %v656
    %658 = vmatmul.bf16.gmra.mxu0 %v370
    %v659 = vpop.f32.mrf.mxu0
    %v660 = vadd.f32 0.0, %v659
    %v661 = vpop.f32.mrf.mxu0
    %v662 = vadd.f32 0.0, %v661
    %663 = vmatmul.bf16.gmra.mxu0 %v373
    %v664 = vpop.f32.mrf.mxu0
    %v665 = vadd.f32 0.0, %v664
    %v666 = vpop.f32.mrf.mxu0
    %v667 = vadd.f32 0.0, %v666
    %668 = vmatmul.bf16.gmra.mxu0 %v376
    %v669 = vpop.f32.mrf.mxu0
    %v670 = vadd.f32 0.0, %v669
    %v671 = vpop.f32.mrf.mxu0
    %v672 = vadd.f32 0.0, %v671
    %673 = vmatmul.bf16.gmra.mxu0 %v379
    %v674 = vpop.f32.mrf.mxu0
    %v675 = vadd.f32 0.0, %v674
    %v676 = vpop.f32.mrf.mxu0
    %v677 = vadd.f32 0.0, %v676
    %678 = vmatmul.bf16.gmra.mxu0 %v382
    %v679 = vpop.f32.mrf.mxu0
    %v680 = vadd.f32 0.0, %v679
    %v681 = vpop.f32.mrf.mxu0
    %v682 = vadd.f32 0.0, %v681
    %683 = vmatmul.bf16.gmra.mxu0 %v385
    %v684 = vpop.f32.mrf.mxu0
    %v685 = vadd.f32 0.0, %v684
    %v686 = vpop.f32.mrf.mxu0
    %v687 = vadd.f32 0.0, %v686
    %688 = vmatmul.bf16.gmra.mxu0 %v388
    %v689 = vpop.f32.mrf.mxu0
    %v690 = vadd.f32 0.0, %v689
    %v691 = vpop.f32.mrf.mxu0
    %v692 = vadd.f32 0.0, %v691
    %693 = vmatmul.bf16.gmra.mxu0 %v391
    %v694 = vpop.f32.mrf.mxu0
    %v695 = vadd.f32 0.0, %v694
    %v696 = vpop.f32.mrf.mxu0
    %v697 = vadd.f32 0.0, %v696
    %698 = vmatmul.bf16.gmra.mxu0 %v394
    %v699 = vpop.f32.mrf.mxu0
    %v700 = vadd.f32 0.0, %v699
    %v701 = vpop.f32.mrf.mxu0
    %v702 = vadd.f32 0.0, %v701
    %703 = vmatmul.bf16.gmra.mxu0 %v397
    %v704 = vpop.f32.mrf.mxu0
    %v705 = vadd.f32 0.0, %v704
    %v706 = vpop.f32.mrf.mxu0
    %v707 = vadd.f32 0.0, %v706
    %708 = vmatmul.bf16.gmra.mxu0 %v400
    %v709 = vpop.f32.mrf.mxu0
    %v710 = vadd.f32 0.0, %v709
    %v711 = vpop.f32.mrf.mxu0
    %v712 = vadd.f32 0.0, %v711
    %713 = vmatmul.bf16.gmra.mxu0 %v403
    %v714 = vpop.f32.mrf.mxu0
    %v715 = vadd.f32 0.0, %v714
    %v716 = vpop.f32.mrf.mxu0
    %v717 = vadd.f32 0.0, %v716
    %718 = vdwg.mxu0
    %719 = vmatpush.bf16.msra.mxu0 %v577
    %720 = vmatpush.bf16.msra.mxu0 %v576
    %721 = vmatpush.bf16.msra.mxu0 %v575
    %722 = vmatpush.bf16.msra.mxu0 %v574
    %723 = vmatpush.bf16.msra.mxu0 %v573
    %724 = vmatpush.bf16.msra.mxu0 %v572
    %725 = vmatpush.bf16.msra.mxu0 %v571
    %726 = vmatpush.bf16.msra.mxu0 %v570
    %727 = vmatmul.bf16.gmra.mxu0 %v347
    %v728 = vpop.f32.mrf.mxu0
    %v729 = vadd.f32 %v620, %v728
    %v730 = vpop.f32.mrf.mxu0
    %v731 = vadd.f32 %v622, %v730
    %732 = vmatmul.bf16.gmra.mxu0 %v350
    %v733 = vpop.f32.mrf.mxu0
    %v734 = vadd.f32 %v625, %v733
    %v735 = vpop.f32.mrf.mxu0
    %v736 = vadd.f32 %v627, %v735
    %737 = vmatmul.bf16.gmra.mxu0 %v353
    %v738 = vpop.f32.mrf.mxu0
    %v739 = vadd.f32 %v630, %v738
    %v740 = vpop.f32.mrf.mxu0
    %v741 = vadd.f32 %v632, %v740
    %742 = vmatmul.bf16.gmra.mxu0 %v356
    %v743 = vpop.f32.mrf.mxu0
    %v744 = vadd.f32 %v635, %v743
    %v745 = vpop.f32.mrf.mxu0
    %v746 = vadd.f32 %v637, %v745
    %747 = vmatmul.bf16.gmra.mxu0 %v359
    %v748 = vpop.f32.mrf.mxu0
    %v749 = vadd.f32 %v640, %v748
    %v750 = vpop.f32.mrf.mxu0
    %v751 = vadd.f32 %v642, %v750
    %752 = vmatmul.bf16.gmra.mxu0 %v362
    %v753 = vpop.f32.mrf.mxu0
    %v754 = vadd.f32 %v645, %v753
    %v755 = vpop.f32.mrf.mxu0
    %v756 = vadd.f32 %v647, %v755
    %757 = vmatmul.bf16.gmra.mxu0 %v365
    %v758 = vpop.f32.mrf.mxu0
    %v759 = vadd.f32 %v650, %v758
    %v760 = vpop.f32.mrf.mxu0
    %v761 = vadd.f32 %v652, %v760
    %762 = vmatmul.bf16.gmra.mxu0 %v368
    %v763 = vpop.f32.mrf.mxu0
    %v764 = vadd.f32 %v655, %v763
    %v765 = vpop.f32.mrf.mxu0
    %v766 = vadd.f32 %v657, %v765
    %767 = vmatmul.bf16.gmra.mxu0 %v371
    %v768 = vpop.f32.mrf.mxu0
    %v769 = vadd.f32 %v660, %v768
    %v770 = vpop.f32.mrf.mxu0
    %v771 = vadd.f32 %v662, %v770
    %772 = vmatmul.bf16.gmra.mxu0 %v374
    %v773 = vpop.f32.mrf.mxu0
    %v774 = vadd.f32 %v665, %v773
    %v775 = vpop.f32.mrf.mxu0
    %v776 = vadd.f32 %v667, %v775
    %777 = vmatmul.bf16.gmra.mxu0 %v377
    %v778 = vpop.f32.mrf.mxu0
    %v779 = vadd.f32 %v670, %v778
    %v780 = vpop.f32.mrf.mxu0
    %v781 = vadd.f32 %v672, %v780
    %782 = vmatmul.bf16.gmra.mxu0 %v380
    %v783 = vpop.f32.mrf.mxu0
    %v784 = vadd.f32 %v675, %v783
    %v785 = vpop.f32.mrf.mxu0
    %v786 = vadd.f32 %v677, %v785
    %787 = vmatmul.bf16.gmra.mxu0 %v383
    %v788 = vpop.f32.mrf.mxu0
    %v789 = vadd.f32 %v680, %v788
    %v790 = vpop.f32.mrf.mxu0
    %v791 = vadd.f32 %v682, %v790
    %792 = vmatmul.bf16.gmra.mxu0 %v386
    %v793 = vpop.f32.mrf.mxu0
    %v794 = vadd.f32 %v685, %v793
    %v795 = vpop.f32.mrf.mxu0
    %v796 = vadd.f32 %v687, %v795
    %797 = vmatmul.bf16.gmra.mxu0 %v389
    %v798 = vpop.f32.mrf.mxu0
    %v799 = vadd.f32 %v690, %v798
    %v800 = vpop.f32.mrf.mxu0
    %v801 = vadd.f32 %v692, %v800
    %802 = vmatmul.bf16.gmra.mxu0 %v392
    %v803 = vpop.f32.mrf.mxu0
    %v804 = vadd.f32 %v695, %v803
    %v805 = vpop.f32.mrf.mxu0
    %v806 = vadd.f32 %v697, %v805
    %807 = vmatmul.bf16.gmra.mxu0 %v395
    %v808 = vpop.f32.mrf.mxu0
    %v809 = vadd.f32 %v700, %v808
    %v810 = vpop.f32.mrf.mxu0
    %v811 = vadd.f32 %v702, %v810
    %812 = vmatmul.bf16.gmra.mxu0 %v398
    %v813 = vpop.f32.mrf.mxu0
    %v814 = vadd.f32 %v705, %v813
    %v815 = vpop.f32.mrf.mxu0
    %v816 = vadd.f32 %v707, %v815
    %817 = vmatmul.bf16.gmra.mxu0 %v401
    %v818 = vpop.f32.mrf.mxu0
    %v819 = vadd.f32 %v710, %v818
    %v820 = vpop.f32.mrf.mxu0
    %v821 = vadd.f32 %v712, %v820
    %822 = vmatmul.bf16.gmra.mxu0 %v404
    %v823 = vpop.f32.mrf.mxu0
    %v824 = vadd.f32 %v715, %v823
    %v825 = vpop.f32.mrf.mxu0
    %v826 = vadd.f32 %v717, %v825
    %827 = vdwg.mxu0
    %828 = vmatpush.bf16.msra.mxu0 %v585
    %829 = vmatpush.bf16.msra.mxu0 %v584
    %830 = vmatpush.bf16.msra.mxu0 %v583
    %831 = vmatpush.bf16.msra.mxu0 %v582
    %832 = vmatpush.bf16.msra.mxu0 %v581
    %833 = vmatpush.bf16.msra.mxu0 %v580
    %834 = vmatpush.bf16.msra.mxu0 %v579
    %835 = vmatpush.bf16.msra.mxu0 %v578
    %836 = vmatmul.bf16.gmra.mxu0 %v348
    %v837 = vpop.f32.mrf.mxu0
    %v838 = vadd.f32 %v729, %v837
    %v839 = vpop.f32.mrf.mxu0
    %v840 = vadd.f32 %v731, %v839
    %841 = vmatmul.bf16.gmra.mxu0 %v351
    %v842 = vpop.f32.mrf.mxu0
    %v843 = vadd.f32 %v734, %v842
    %v844 = vpop.f32.mrf.mxu0
    %v845 = vadd.f32 %v736, %v844
    %846 = vmatmul.bf16.gmra.mxu0 %v354
    %v847 = vpop.f32.mrf.mxu0
    %v848 = vadd.f32 %v739, %v847
    %v849 = vpop.f32.mrf.mxu0
    %v850 = vadd.f32 %v741, %v849
    %851 = vmatmul.bf16.gmra.mxu0 %v357
    %v852 = vpop.f32.mrf.mxu0
    %v853 = vadd.f32 %v744, %v852
    %v854 = vpop.f32.mrf.mxu0
    %v855 = vadd.f32 %v746, %v854
    %856 = vmatmul.bf16.gmra.mxu0 %v360
    %v857 = vpop.f32.mrf.mxu0
    %v858 = vadd.f32 %v749, %v857
    %v859 = vpop.f32.mrf.mxu0
    %v860 = vadd.f32 %v751, %v859
    %861 = vmatmul.bf16.gmra.mxu0 %v363
    %v862 = vpop.f32.mrf.mxu0
    %v863 = vadd.f32 %v754, %v862
    %v864 = vpop.f32.mrf.mxu0
    %v865 = vadd.f32 %v756, %v864
    %866 = vmatmul.bf16.gmra.mxu0 %v366
    %v867 = vpop.f32.mrf.mxu0
    %v868 = vadd.f32 %v759, %v867
    %v869 = vpop.f32.mrf.mxu0
    %v870 = vadd.f32 %v761, %v869
    %871 = vmatmul.bf16.gmra.mxu0 %v369
    %v872 = vpop.f32.mrf.mxu0
    %v873 = vadd.f32 %v764, %v872
    %v874 = vpop.f32.mrf.mxu0
    %v875 = vadd.f32 %v766, %v874
    %876 = vmatmul.bf16.gmra.mxu0 %v372
    %v877 = vpop.f32.mrf.mxu0
    %v878 = vadd.f32 %v769, %v877
    %v879 = vpop.f32.mrf.mxu0
    %v880 = vadd.f32 %v771, %v879
    %881 = vmatmul.bf16.gmra.mxu0 %v375
    %v882 = vpop.f32.mrf.mxu0
    %v883 = vadd.f32 %v774, %v882
    %v884 = vpop.f32.mrf.mxu0
    %v885 = vadd.f32 %v776, %v884
    %886 = vmatmul.bf16.gmra.mxu0 %v378
    %v887 = vpop.f32.mrf.mxu0
    %v888 = vadd.f32 %v779, %v887
    %v889 = vpop.f32.mrf.mxu0
    %v890 = vadd.f32 %v781, %v889
    %891 = vmatmul.bf16.gmra.mxu0 %v381
    %v892 = vpop.f32.mrf.mxu0
    %v893 = vadd.f32 %v784, %v892
    %v894 = vpop.f32.mrf.mxu0
    %v895 = vadd.f32 %v786, %v894
    %896 = vmatmul.bf16.gmra.mxu0 %v384
    %v897 = vpop.f32.mrf.mxu0
    %v898 = vadd.f32 %v789, %v897
    %v899 = vpop.f32.mrf.mxu0
    %v900 = vadd.f32 %v791, %v899
    %901 = vmatmul.bf16.gmra.mxu0 %v387
    %v902 = vpop.f32.mrf.mxu0
    %v903 = vadd.f32 %v794, %v902
    %v904 = vpop.f32.mrf.mxu0
    %v905 = vadd.f32 %v796, %v904
    %906 = vmatmul.bf16.gmra.mxu0 %v390
    %v907 = vpop.f32.mrf.mxu0
    %v908 = vadd.f32 %v799, %v907
    %v909 = vpop.f32.mrf.mxu0
    %v910 = vadd.f32 %v801, %v909
    %911 = vmatmul.bf16.gmra.mxu0 %v393
    %v912 = vpop.f32.mrf.mxu0
    %v913 = vadd.f32 %v804, %v912
    %v914 = vpop.f32.mrf.mxu0
    %v915 = vadd.f32 %v806, %v914
    %916 = vmatmul.bf16.gmra.mxu0 %v396
    %v917 = vpop.f32.mrf.mxu0
    %v918 = vadd.f32 %v809, %v917
    %v919 = vpop.f32.mrf.mxu0
    %v920 = vadd.f32 %v811, %v919
    %921 = vmatmul.bf16.gmra.mxu0 %v399
    %v922 = vpop.f32.mrf.mxu0
    %v923 = vadd.f32 %v814, %v922
    %v924 = vpop.f32.mrf.mxu0
    %v925 = vadd.f32 %v816, %v924
    %926 = vmatmul.bf16.gmra.mxu0 %v402
    %v927 = vpop.f32.mrf.mxu0
    %v928 = vadd.f32 %v819, %v927
    %v929 = vpop.f32.mrf.mxu0
    %v930 = vadd.f32 %v821, %v929
    %931 = vmatmul.bf16.gmra.mxu0 %v405
    %v932 = vpop.f32.mrf.mxu0
    %v933 = vadd.f32 %v824, %v932
    %v934 = vpop.f32.mrf.mxu0
    %v935 = vadd.f32 %v826, %v934
    %936 = vdwg.mxu0
    %v937 = vmax.f32 %v838, %v848
    %v938 = vmax.f32 %v840, %v850
    %v939 = vmax.f32 %v843, %v853
    %v940 = vmax.f32 %v845, %v855
    %v941 = vmax.f32 %v937, %v858
    %v942 = vmax.f32 %v938, %v860
    %v943 = vmax.f32 %v939, %v863
    %v944 = vmax.f32 %v940, %v865
    %v945 = vmax.f32 %v941, %v868
    %v946 = vmax.f32 %v942, %v870
    %v947 = vmax.f32 %v943, %v873
    %v948 = vmax.f32 %v944, %v875
    %v949 = vmax.f32 %v945, %v878
    %v950 = vmax.f32 %v946, %v880
    %v951 = vmax.f32 %v947, %v883
    %v952 = vmax.f32 %v948, %v885
    %v953 = vpack.c.bf16 %v949, %v949
    %v954 = vpack.c.bf16 %v950, %v950
    %v955 = vpack.c.bf16 %v951, %v951
    %v956 = vpack.c.bf16 %v952, %v952
    %v959 = vunpack.c.l.b16 %v953
    %v960 = vunpack.c.l.b16 %v954
    %v961 = vpack.c.b16 %v960, %v959
    %v965 = vunpack.c.l.b16 %v955
    %v966 = vunpack.c.l.b16 %v956
    %v967 = vpack.c.b16 %v966, %v965
    %v969 = vrot.slane %v961, 4
    %v970 = vrot.slane %v967, 4
    %v973 = vrot.slane %v961, 2
    %v974 = vrot.slane %v967, 2
    %v975 = vrot.slane %v969, 2
    %v976 = vrot.slane %v970, 2
    %v981 = vrot.slane %v961, 1
    %v982 = vrot.slane %v967, 1
    %v983 = vrot.slane %v969, 1
    %v984 = vrot.slane %v970, 1
    %v985 = vrot.slane %v973, 1
    %v986 = vrot.slane %v974, 1
    %v987 = vrot.slane %v975, 1
    %v988 = vrot.slane %v976, 1
    %v998 = vshrl.u32 %v961, 16
    %v1001 = vshrl.u32 %v967, 16
    %v1004 = vshrl.u32 %v969, 16
    %v1007 = vshrl.u32 %v970, 16
    %v1010 = vshrl.u32 %v973, 16
    %v1013 = vshrl.u32 %v974, 16
    %v1016 = vshrl.u32 %v975, 16
    %v1019 = vshrl.u32 %v976, 16
    %v1022 = vshrl.u32 %v981, 16
    %v1025 = vshrl.u32 %v982, 16
    %v1028 = vshrl.u32 %v983, 16
    %v1031 = vshrl.u32 %v984, 16
    %v1034 = vshrl.u32 %v985, 16
    %v1037 = vshrl.u32 %v986, 16
    %v1040 = vshrl.u32 %v987, 16
    %v1043 = vshrl.u32 %v988, 16
    %v1061 = vmax.f32 %v888, %v898
    %v1062 = vmax.f32 %v890, %v900
    %v1063 = vmax.f32 %v893, %v903
    %v1064 = vmax.f32 %v895, %v905
    %v1065 = vmax.f32 %v1061, %v908
    %v1066 = vmax.f32 %v1062, %v910
    %v1067 = vmax.f32 %v1063, %v913
    %v1068 = vmax.f32 %v1064, %v915
    %v1069 = vmax.f32 %v1065, %v918
    %v1070 = vmax.f32 %v1066, %v920
    %v1071 = vmax.f32 %v1067, %v923
    %v1072 = vmax.f32 %v1068, %v925
    %v1073 = vmax.f32 %v1069, %v928
    %v1074 = vmax.f32 %v1070, %v930
    %v1075 = vmax.f32 %v1071, %v933
    %v1076 = vmax.f32 %v1072, %v935
    %v1077 = vpack.c.bf16 %v1073, %v1073
    %v1078 = vpack.c.bf16 %v1074, %v1074
    %v1079 = vpack.c.bf16 %v1075, %v1075
    %v1080 = vpack.c.bf16 %v1076, %v1076
    %v1083 = vunpack.c.l.b16 %v1077
    %v1084 = vunpack.c.l.b16 %v1078
    %v1085 = vpack.c.b16 %v1084, %v1083
    %v1088 = vunpack.c.l.b16 %v1079
    %v1089 = vunpack.c.l.b16 %v1080
    %v1090 = vpack.c.b16 %v1089, %v1088
    %v1091 = vrot.slane %v1085, 4
    %v1092 = vrot.slane %v1090, 4
    %v1093 = vrot.slane %v1085, 2
    %v1094 = vrot.slane %v1090, 2
    %v1095 = vrot.slane %v1091, 2
    %v1096 = vrot.slane %v1092, 2
    %v1097 = vrot.slane %v1085, 1
    %v1098 = vrot.slane %v1090, 1
    %v1099 = vrot.slane %v1091, 1
    %v1100 = vrot.slane %v1092, 1
    %v1101 = vrot.slane %v1093, 1
    %v1102 = vrot.slane %v1094, 1
    %v1103 = vrot.slane %v1095, 1
    %v1104 = vrot.slane %v1096, 1
    %v1106 = vshrl.u32 %v1085, 16
    %v1109 = vshrl.u32 %v1090, 16
    %v1112 = vshrl.u32 %v1091, 16
    %v1115 = vshrl.u32 %v1092, 16
    %v1118 = vshrl.u32 %v1093, 16
    %v1121 = vshrl.u32 %v1094, 16
    %v1124 = vshrl.u32 %v1095, 16
    %v1127 = vshrl.u32 %v1096, 16
    %v1130 = vshrl.u32 %v1097, 16
    %v1133 = vshrl.u32 %v1098, 16
    %v1136 = vshrl.u32 %v1099, 16
    %v1139 = vshrl.u32 %v1100, 16
    %v1142 = vshrl.u32 %v1101, 16
    %v1145 = vshrl.u32 %v1102, 16
    %v1148 = vshrl.u32 %v1103, 16
    %v1151 = vshrl.u32 %v1104, 16
    %v1153 = vshll.u32 %v1085, 16
    %v1155 = vshll.u32 %v1090, 16
    %v1157 = vshll.u32 %v1091, 16
    %v1159 = vshll.u32 %v1092, 16
    %v1161 = vshll.u32 %v1093, 16
    %v1163 = vshll.u32 %v1094, 16
    %v1165 = vshll.u32 %v1095, 16
    %v1167 = vshll.u32 %v1096, 16
    %v1169 = vshll.u32 %v1097, 16
    %v1171 = vshll.u32 %v1098, 16
    %v1173 = vshll.u32 %v1099, 16
    %v1175 = vshll.u32 %v1100, 16
    %v1177 = vshll.u32 %v1101, 16
    %v1179 = vshll.u32 %v1102, 16
    %v1181 = vshll.u32 %v1103, 16
    %v1183 = vshll.u32 %v1104, 16
    %v1186 = vshll.u32 %v1106, 16
    %v1189 = vshll.u32 %v1109, 16
    %v1192 = vshll.u32 %v1112, 16
    %v1195 = vshll.u32 %v1115, 16
    %v1198 = vshll.u32 %v1118, 16
    %v1201 = vshll.u32 %v1121, 16
    %v1204 = vshll.u32 %v1124, 16
    %v1207 = vshll.u32 %v1127, 16
    %v1210 = vshll.u32 %v1130, 16
    %v1213 = vshll.u32 %v1133, 16
    %v1216 = vshll.u32 %v1136, 16
    %v1219 = vshll.u32 %v1139, 16
    %v1222 = vshll.u32 %v1142, 16
    %v1225 = vshll.u32 %v1145, 16
    %v1228 = vshll.u32 %v1148, 16
    %v1231 = vshll.u32 %v1151, 16
    %vm1265 = vcmask 1040384
    %vm1266 = vsmask.f32 256
    %vm1267 = vmand %vm1265, %vm1266
    %v1268 = vsel %vm1267, %v961, %v1153
    %v1269 = vsel %vm1267, %v967, %v1155
    %v1270 = vsel %vm1267, %v969, %v1157
    %v1271 = vsel %vm1267, %v970, %v1159
    %v1272 = vsel %vm1267, %v973, %v1161
    %v1273 = vsel %vm1267, %v974, %v1163
    %v1274 = vsel %vm1267, %v975, %v1165
    %v1275 = vsel %vm1267, %v976, %v1167
    %v1276 = vsel %vm1267, %v981, %v1169
    %v1277 = vsel %vm1267, %v982, %v1171
    %v1278 = vsel %vm1267, %v983, %v1173
    %v1279 = vsel %vm1267, %v984, %v1175
    %v1280 = vsel %vm1267, %v985, %v1177
    %v1281 = vsel %vm1267, %v986, %v1179
    %v1282 = vsel %vm1267, %v987, %v1181
    %v1283 = vsel %vm1267, %v988, %v1183
    %v1284 = vsel %vm1267, %v998, %v1186
    %v1285 = vsel %vm1267, %v1001, %v1189
    %v1286 = vsel %vm1267, %v1004, %v1192
    %v1287 = vsel %vm1267, %v1007, %v1195
    %v1288 = vsel %vm1267, %v1010, %v1198
    %v1289 = vsel %vm1267, %v1013, %v1201
    %v1290 = vsel %vm1267, %v1016, %v1204
    %v1291 = vsel %vm1267, %v1019, %v1207
    %v1292 = vsel %vm1267, %v1022, %v1210
    %v1293 = vsel %vm1267, %v1025, %v1213
    %v1294 = vsel %vm1267, %v1028, %v1216
    %v1295 = vsel %vm1267, %v1031, %v1219
    %v1296 = vsel %vm1267, %v1034, %v1222
    %v1297 = vsel %vm1267, %v1037, %v1225
    %v1298 = vsel %vm1267, %v1040, %v1228
    %v1299 = vsel %vm1267, %v1043, %v1231
    %v1300 = vld [vmem:[%s2] sm:$0xf]
    %v1301 = vld [vmem:[%s2 + $0x4] sm:$0xf]
    %v1302 = vld [vmem:[%s2 + $0x8] sm:$0xf]
    %v1303 = vld [vmem:[%s2 + $0xc] sm:$0xf]
    %v1304 = vld [vmem:[%s2 + $0x10] sm:$0xf]
    %v1305 = vld [vmem:[%s2 + $0x14] sm:$0xf]
    %v1306 = vld [vmem:[%s2 + $0x18] sm:$0xf]
    %v1307 = vld [vmem:[%s2 + $0x1c] sm:$0xf]
    %v1308 = vld [vmem:[%s2 + $0x20] sm:$0xf]
    %v1309 = vld [vmem:[%s2 + $0x24] sm:$0xf]
    %v1310 = vld [vmem:[%s2 + $0x28] sm:$0xf]
    %v1311 = vld [vmem:[%s2 + $0x2c] sm:$0xf]
    %v1312 = vld [vmem:[%s2 + $0x30] sm:$0xf]
    %v1313 = vld [vmem:[%s2 + $0x34] sm:$0xf]
    %v1314 = vld [vmem:[%s2 + $0x38] sm:$0xf]
    %v1315 = vld [vmem:[%s2 + $0x3c] sm:$0xf]
    %v1316 = vld [vmem:[%s2 + $0x40] sm:$0xf]
    %v1317 = vld [vmem:[%s2 + $0x44] sm:$0xf]
    %v1318 = vld [vmem:[%s2 + $0x48] sm:$0xf]
    %v1319 = vld [vmem:[%s2 + $0x4c] sm:$0xf]
    %v1320 = vld [vmem:[%s2 + $0x50] sm:$0xf]
    %v1321 = vld [vmem:[%s2 + $0x54] sm:$0xf]
    %v1322 = vld [vmem:[%s2 + $0x58] sm:$0xf]
    %v1323 = vld [vmem:[%s2 + $0x5c] sm:$0xf]
    %v1324 = vld [vmem:[%s2 + $0x60] sm:$0xf]
    %v1325 = vld [vmem:[%s2 + $0x64] sm:$0xf]
    %v1326 = vld [vmem:[%s2 + $0x68] sm:$0xf]
    %v1327 = vld [vmem:[%s2 + $0x6c] sm:$0xf]
    %v1328 = vld [vmem:[%s2 + $0x70] sm:$0xf]
    %v1329 = vld [vmem:[%s2 + $0x74] sm:$0xf]
    %v1330 = vld [vmem:[%s2 + $0x78] sm:$0xf]
    %v1331 = vld [vmem:[%s2 + $0x7c] sm:$0xf]
    %v1332 = vld [vmem:[%s2 + $0x80] sm:$0xf]
    %v1333 = vld [vmem:[%s2 + $0x84] sm:$0xf]
    %v1334 = vld [vmem:[%s2 + $0x88] sm:$0xf]
    %v1335 = vld [vmem:[%s2 + $0x8c] sm:$0xf]
    %v1336 = vld [vmem:[%s2 + $0x90] sm:$0xf]
    %v1337 = vld [vmem:[%s2 + $0x94] sm:$0xf]
    %v1338 = vld [vmem:[%s2 + $0x98] sm:$0xf]
    %v1339 = vld [vmem:[%s2 + $0x9c] sm:$0xf]
    %v1340 = vld [vmem:[%s2 + $0xa0] sm:$0xf]
    %v1341 = vld [vmem:[%s2 + $0xa4] sm:$0xf]
    %v1342 = vld [vmem:[%s2 + $0xa8] sm:$0xf]
    %v1343 = vld [vmem:[%s2 + $0xac] sm:$0xf]
    %v1344 = vld [vmem:[%s2 + $0xb0] sm:$0xf]
    %v1345 = vld [vmem:[%s2 + $0xb4] sm:$0xf]
    %v1346 = vld [vmem:[%s2 + $0xb8] sm:$0xf]
    %v1347 = vld [vmem:[%s2 + $0xbc] sm:$0xf]
    %v1348 = vld [vmem:[%s2 + $0xc0] sm:$0xf]
    %v1349 = vld [vmem:[%s2 + $0xc4] sm:$0xf]
    %v1350 = vld [vmem:[%s2 + $0xc8] sm:$0xf]
    %v1351 = vld [vmem:[%s2 + $0xcc] sm:$0xf]
    %v1352 = vld [vmem:[%s2 + $0xd0] sm:$0xf]
    %v1353 = vld [vmem:[%s2 + $0xd4] sm:$0xf]
    %v1354 = vld [vmem:[%s2 + $0xd8] sm:$0xf]
    %v1355 = vld [vmem:[%s2 + $0xdc] sm:$0xf]
    %v1356 = vld [vmem:[%s2 + $0xe0] sm:$0xf]
    %v1357 = vld [vmem:[%s2 + $0xe4] sm:$0xf]
    %v1358 = vld [vmem:[%s2 + $0xe8] sm:$0xf]
    %v1359 = vld [vmem:[%s2 + $0xec] sm:$0xf]
    %v1360 = vld [vmem:[%s2 + $0xf0] sm:$0xf]
    %v1361 = vld [vmem:[%s2 + $0xf4] sm:$0xf]
    %v1362 = vld [vmem:[%s2 + $0xf8] sm:$0xf]
    %v1363 = vld [vmem:[%s2 + $0xfc] sm:$0xf]
    %v1364 = vld [vmem:[%s2 + $0x100] sm:$0xf]
    %v1365 = vld [vmem:[%s2 + $0x104] sm:$0xf]
    %v1366 = vld [vmem:[%s2 + $0x108] sm:$0xf]
    %v1367 = vld [vmem:[%s2 + $0x10c] sm:$0xf]
    %v1368 = vld [vmem:[%s2 + $0x110] sm:$0xf]
    %v1369 = vld [vmem:[%s2 + $0x114] sm:$0xf]
    %v1370 = vld [vmem:[%s2 + $0x118] sm:$0xf]
    %v1371 = vld [vmem:[%s2 + $0x11c] sm:$0xf]
    %v1372 = vld [vmem:[%s2 + $0x120] sm:$0xf]
    %v1373 = vld [vmem:[%s2 + $0x124] sm:$0xf]
    %v1374 = vld [vmem:[%s2 + $0x128] sm:$0xf]
    %v1375 = vld [vmem:[%s2 + $0x12c] sm:$0xf]
    %v1376 = vld [vmem:[%s2 + $0x130] sm:$0xf]
    %v1377 = vld [vmem:[%s2 + $0x134] sm:$0xf]
    %v1378 = vld [vmem:[%s2 + $0x138] sm:$0xf]
    %v1379 = vld [vmem:[%s2 + $0x13c] sm:$0xf]
    %v1380 = vld [vmem:[%s2 + $0x140] sm:$0xf]
    %v1381 = vld [vmem:[%s2 + $0x144] sm:$0xf]
    %v1382 = vld [vmem:[%s2 + $0x148] sm:$0xf]
    %v1383 = vld [vmem:[%s2 + $0x14c] sm:$0xf]
    %v1384 = vld [vmem:[%s2 + $0x150] sm:$0xf]
    %v1385 = vld [vmem:[%s2 + $0x154] sm:$0xf]
    %v1386 = vld [vmem:[%s2 + $0x158] sm:$0xf]
    %v1387 = vld [vmem:[%s2 + $0x15c] sm:$0xf]
    %v1388 = vld [vmem:[%s2 + $0x160] sm:$0xf]
    %v1389 = vld [vmem:[%s2 + $0x164] sm:$0xf]
    %v1390 = vld [vmem:[%s2 + $0x168] sm:$0xf]
    %v1391 = vld [vmem:[%s2 + $0x16c] sm:$0xf]
    %v1392 = vld [vmem:[%s2 + $0x170] sm:$0xf]
    %v1393 = vld [vmem:[%s2 + $0x174] sm:$0xf]
    %v1394 = vld [vmem:[%s2 + $0x178] sm:$0xf]
    %v1395 = vld [vmem:[%s2 + $0x17c] sm:$0xf]
    %v1396 = vld [vmem:[%s2 + $0x180] sm:$0xf]
    %v1397 = vld [vmem:[%s2 + $0x184] sm:$0xf]
    %v1398 = vld [vmem:[%s2 + $0x188] sm:$0xf]
    %v1399 = vld [vmem:[%s2 + $0x18c] sm:$0xf]
    %v1400 = vld [vmem:[%s2 + $0x190] sm:$0xf]
    %v1401 = vld [vmem:[%s2 + $0x194] sm:$0xf]
    %v1402 = vld [vmem:[%s2 + $0x198] sm:$0xf]
    %v1403 = vld [vmem:[%s2 + $0x19c] sm:$0xf]
    %v1404 = vld [vmem:[%s2 + $0x1a0] sm:$0xf]
    %v1405 = vld [vmem:[%s2 + $0x1a4] sm:$0xf]
    %v1406 = vld [vmem:[%s2 + $0x1a8] sm:$0xf]
    %v1407 = vld [vmem:[%s2 + $0x1ac] sm:$0xf]
    %v1408 = vld [vmem:[%s2 + $0x1b0] sm:$0xf]
    %v1409 = vld [vmem:[%s2 + $0x1b4] sm:$0xf]
    %v1410 = vld [vmem:[%s2 + $0x1b8] sm:$0xf]
    %v1411 = vld [vmem:[%s2 + $0x1bc] sm:$0xf]
    %v1412 = vld [vmem:[%s2 + $0x1c0] sm:$0xf]
    %v1413 = vld [vmem:[%s2 + $0x1c4] sm:$0xf]
    %v1414 = vld [vmem:[%s2 + $0x1c8] sm:$0xf]
    %v1415 = vld [vmem:[%s2 + $0x1cc] sm:$0xf]
    %v1416 = vld [vmem:[%s2 + $0x1d0] sm:$0xf]
    %v1417 = vld [vmem:[%s2 + $0x1d4] sm:$0xf]
    %v1418 = vld [vmem:[%s2 + $0x1d8] sm:$0xf]
    %v1419 = vld [vmem:[%s2 + $0x1dc] sm:$0xf]
    %v1420 = vld [vmem:[%s2 + $0x1e0] sm:$0xf]
    %v1421 = vld [vmem:[%s2 + $0x1e4] sm:$0xf]
    %v1422 = vld [vmem:[%s2 + $0x1e8] sm:$0xf]
    %v1423 = vld [vmem:[%s2 + $0x1ec] sm:$0xf]
    %v1424 = vld [vmem:[%s2 + $0x1f0] sm:$0xf]
    %v1425 = vld [vmem:[%s2 + $0x1f4] sm:$0xf]
    %v1426 = vld [vmem:[%s2 + $0x1f8] sm:$0xf]
    %v1427 = vld [vmem:[%s2 + $0x1fc] sm:$0xf]
    %v1428 = vld [vmem:[%s2 + $0x200] sm:$0xf]
    %v1429 = vld [vmem:[%s2 + $0x204] sm:$0xf]
    %v1430 = vld [vmem:[%s2 + $0x208] sm:$0xf]
    %v1431 = vld [vmem:[%s2 + $0x20c] sm:$0xf]
    %v1432 = vld [vmem:[%s2 + $0x210] sm:$0xf]
    %v1433 = vld [vmem:[%s2 + $0x214] sm:$0xf]
    %v1434 = vld [vmem:[%s2 + $0x218] sm:$0xf]
    %v1435 = vld [vmem:[%s2 + $0x21c] sm:$0xf]
    %v1436 = vld [vmem:[%s2 + $0x220] sm:$0xf]
    %v1437 = vld [vmem:[%s2 + $0x224] sm:$0xf]
    %v1438 = vld [vmem:[%s2 + $0x228] sm:$0xf]
    %v1439 = vld [vmem:[%s2 + $0x22c] sm:$0xf]
    %v1440 = vld [vmem:[%s2 + $0x230] sm:$0xf]
    %v1441 = vld [vmem:[%s2 + $0x234] sm:$0xf]
    %v1442 = vld [vmem:[%s2 + $0x238] sm:$0xf]
    %v1443 = vld [vmem:[%s2 + $0x23c] sm:$0xf]
    %v1444 = vld [vmem:[%s2 + $0x240] sm:$0xf]
    %v1445 = vld [vmem:[%s2 + $0x244] sm:$0xf]
    %v1446 = vld [vmem:[%s2 + $0x248] sm:$0xf]
    %v1447 = vld [vmem:[%s2 + $0x24c] sm:$0xf]
    %v1448 = vld [vmem:[%s2 + $0x250] sm:$0xf]
    %v1449 = vld [vmem:[%s2 + $0x254] sm:$0xf]
    %v1450 = vld [vmem:[%s2 + $0x258] sm:$0xf]
    %v1451 = vld [vmem:[%s2 + $0x25c] sm:$0xf]
    %v1452 = vld [vmem:[%s2 + $0x260] sm:$0xf]
    %v1453 = vld [vmem:[%s2 + $0x264] sm:$0xf]
    %v1454 = vld [vmem:[%s2 + $0x268] sm:$0xf]
    %v1455 = vld [vmem:[%s2 + $0x26c] sm:$0xf]
    %v1456 = vld [vmem:[%s2 + $0x270] sm:$0xf]
    %v1457 = vld [vmem:[%s2 + $0x274] sm:$0xf]
    %v1458 = vld [vmem:[%s2 + $0x278] sm:$0xf]
    %v1459 = vld [vmem:[%s2 + $0x27c] sm:$0xf]
    %v1460 = vld [vmem:[%s2 + $0x280] sm:$0xf]
    %v1461 = vld [vmem:[%s2 + $0x284] sm:$0xf]
    %v1462 = vld [vmem:[%s2 + $0x288] sm:$0xf]
    %v1463 = vld [vmem:[%s2 + $0x28c] sm:$0xf]
    %v1464 = vld [vmem:[%s2 + $0x290] sm:$0xf]
    %v1465 = vld [vmem:[%s2 + $0x294] sm:$0xf]
    %v1466 = vld [vmem:[%s2 + $0x298] sm:$0xf]
    %v1467 = vld [vmem:[%s2 + $0x29c] sm:$0xf]
    %v1468 = vld [vmem:[%s2 + $0x2a0] sm:$0xf]
    %v1469 = vld [vmem:[%s2 + $0x2a4] sm:$0xf]
    %v1470 = vld [vmem:[%s2 + $0x2a8] sm:$0xf]
    %v1471 = vld [vmem:[%s2 + $0x2ac] sm:$0xf]
    %v1472 = vld [vmem:[%s2 + $0x2b0] sm:$0xf]
    %v1473 = vld [vmem:[%s2 + $0x2b4] sm:$0xf]
    %v1474 = vld [vmem:[%s2 + $0x2b8] sm:$0xf]
    %v1475 = vld [vmem:[%s2 + $0x2bc] sm:$0xf]
    %v1476 = vld [vmem:[%s2 + $0x2c0] sm:$0xf]
    %v1477 = vld [vmem:[%s2 + $0x2c4] sm:$0xf]
    %v1478 = vld [vmem:[%s2 + $0x2c8] sm:$0xf]
    %v1479 = vld [vmem:[%s2 + $0x2cc] sm:$0xf]
    %v1480 = vld [vmem:[%s2 + $0x2d0] sm:$0xf]
    %v1481 = vld [vmem:[%s2 + $0x2d4] sm:$0xf]
    %v1482 = vld [vmem:[%s2 + $0x2d8] sm:$0xf]
    %v1483 = vld [vmem:[%s2 + $0x2dc] sm:$0xf]
    %v1484 = vld [vmem:[%s2 + $0x2e0] sm:$0xf]
    %v1485 = vld [vmem:[%s2 + $0x2e4] sm:$0xf]
    %v1486 = vld [vmem:[%s2 + $0x2e8] sm:$0xf]
    %v1487 = vld [vmem:[%s2 + $0x2ec] sm:$0xf]
    %v1488 = vld [vmem:[%s2 + $0x2f0] sm:$0xf]
    %v1489 = vld [vmem:[%s2 + $0x2f4] sm:$0xf]
    %v1490 = vld [vmem:[%s2 + $0x2f8] sm:$0xf]
    %v1491 = vld [vmem:[%s2 + $0x2fc] sm:$0xf]
    %v1492 = vld [vmem:[%s2 + $0x300] sm:$0xf]
    %v1493 = vld [vmem:[%s2 + $0x304] sm:$0xf]
    %v1494 = vld [vmem:[%s2 + $0x308] sm:$0xf]
    %v1495 = vld [vmem:[%s2 + $0x30c] sm:$0xf]
    %v1496 = vld [vmem:[%s2 + $0x310] sm:$0xf]
    %v1497 = vld [vmem:[%s2 + $0x314] sm:$0xf]
    %v1498 = vld [vmem:[%s2 + $0x318] sm:$0xf]
    %v1499 = vld [vmem:[%s2 + $0x31c] sm:$0xf]
    %v1500 = vld [vmem:[%s2 + $0x320] sm:$0xf]
    %v1501 = vld [vmem:[%s2 + $0x324] sm:$0xf]
    %v1502 = vld [vmem:[%s2 + $0x328] sm:$0xf]
    %v1503 = vld [vmem:[%s2 + $0x32c] sm:$0xf]
    %v1504 = vld [vmem:[%s2 + $0x330] sm:$0xf]
    %v1505 = vld [vmem:[%s2 + $0x334] sm:$0xf]
    %v1506 = vld [vmem:[%s2 + $0x338] sm:$0xf]
    %v1507 = vld [vmem:[%s2 + $0x33c] sm:$0xf]
    %v1508 = vld [vmem:[%s2 + $0x340] sm:$0xf]
    %v1509 = vld [vmem:[%s2 + $0x344] sm:$0xf]
    %v1510 = vld [vmem:[%s2 + $0x348] sm:$0xf]
    %v1511 = vld [vmem:[%s2 + $0x34c] sm:$0xf]
    %v1512 = vld [vmem:[%s2 + $0x350] sm:$0xf]
    %v1513 = vld [vmem:[%s2 + $0x354] sm:$0xf]
    %v1514 = vld [vmem:[%s2 + $0x358] sm:$0xf]
    %v1515 = vld [vmem:[%s2 + $0x35c] sm:$0xf]
    %v1516 = vld [vmem:[%s2 + $0x360] sm:$0xf]
    %v1517 = vld [vmem:[%s2 + $0x364] sm:$0xf]
    %v1518 = vld [vmem:[%s2 + $0x368] sm:$0xf]
    %v1519 = vld [vmem:[%s2 + $0x36c] sm:$0xf]
    %v1520 = vld [vmem:[%s2 + $0x370] sm:$0xf]
    %v1521 = vld [vmem:[%s2 + $0x374] sm:$0xf]
    %v1522 = vld [vmem:[%s2 + $0x378] sm:$0xf]
    %v1523 = vld [vmem:[%s2 + $0x37c] sm:$0xf]
    %v1524 = vld [vmem:[%s2 + $0x380] sm:$0xf]
    %v1525 = vld [vmem:[%s2 + $0x384] sm:$0xf]
    %v1526 = vld [vmem:[%s2 + $0x388] sm:$0xf]
    %v1527 = vld [vmem:[%s2 + $0x38c] sm:$0xf]
    %v1528 = vld [vmem:[%s2 + $0x390] sm:$0xf]
    %v1529 = vld [vmem:[%s2 + $0x394] sm:$0xf]
    %v1530 = vld [vmem:[%s2 + $0x398] sm:$0xf]
    %v1531 = vld [vmem:[%s2 + $0x39c] sm:$0xf]
    %v1532 = vld [vmem:[%s2 + $0x3a0] sm:$0xf]
    %v1533 = vld [vmem:[%s2 + $0x3a4] sm:$0xf]
    %v1534 = vld [vmem:[%s2 + $0x3a8] sm:$0xf]
    %v1535 = vld [vmem:[%s2 + $0x3ac] sm:$0xf]
    %v1536 = vld [vmem:[%s2 + $0x3b0] sm:$0xf]
    %v1537 = vld [vmem:[%s2 + $0x3b4] sm:$0xf]
    %v1538 = vld [vmem:[%s2 + $0x3b8] sm:$0xf]
    %v1539 = vld [vmem:[%s2 + $0x3bc] sm:$0xf]
    %v1540 = vld [vmem:[%s2 + $0x3c0] sm:$0xf]
    %v1541 = vld [vmem:[%s2 + $0x3c4] sm:$0xf]
    %v1542 = vld [vmem:[%s2 + $0x3c8] sm:$0xf]
    %v1543 = vld [vmem:[%s2 + $0x3cc] sm:$0xf]
    %v1544 = vld [vmem:[%s2 + $0x3d0] sm:$0xf]
    %v1545 = vld [vmem:[%s2 + $0x3d4] sm:$0xf]
    %v1546 = vld [vmem:[%s2 + $0x3d8] sm:$0xf]
    %v1547 = vld [vmem:[%s2 + $0x3dc] sm:$0xf]
    %v1548 = vld [vmem:[%s2 + $0x3e0] sm:$0xf]
    %v1549 = vld [vmem:[%s2 + $0x3e4] sm:$0xf]
    %v1550 = vld [vmem:[%s2 + $0x3e8] sm:$0xf]
    %v1551 = vld [vmem:[%s2 + $0x3ec] sm:$0xf]
    %v1552 = vld [vmem:[%s2 + $0x3f0] sm:$0xf]
    %v1553 = vld [vmem:[%s2 + $0x3f4] sm:$0xf]
    %v1554 = vld [vmem:[%s2 + $0x3f8] sm:$0xf]
    %v1555 = vld [vmem:[%s2 + $0x3fc] sm:$0xf]
    %v1556 = vld [vmem:[%s2 + $0x400] sm:$0xf]
    %v1557 = vld [vmem:[%s2 + $0x404] sm:$0xf]
    %v1558 = vld [vmem:[%s2 + $0x408] sm:$0xf]
    %v1559 = vld [vmem:[%s2 + $0x40c] sm:$0xf]
    %v1560 = vld [vmem:[%s2 + $0x410] sm:$0xf]
    %v1561 = vld [vmem:[%s2 + $0x414] sm:$0xf]
    %v1562 = vld [vmem:[%s2 + $0x418] sm:$0xf]
    %v1563 = vld [vmem:[%s2 + $0x41c] sm:$0xf]
    %v1564 = vld [vmem:[%s2 + $0x420] sm:$0xf]
    %v1565 = vld [vmem:[%s2 + $0x424] sm:$0xf]
    %v1566 = vld [vmem:[%s2 + $0x428] sm:$0xf]
    %v1567 = vld [vmem:[%s2 + $0x42c] sm:$0xf]
    %v1568 = vld [vmem:[%s2 + $0x430] sm:$0xf]
    %v1569 = vld [vmem:[%s2 + $0x434] sm:$0xf]
    %v1570 = vld [vmem:[%s2 + $0x438] sm:$0xf]
    %v1571 = vld [vmem:[%s2 + $0x43c] sm:$0xf]
    %v1572 = vld [vmem:[%s2 + $0x440] sm:$0xf]
    %v1573 = vld [vmem:[%s2 + $0x444] sm:$0xf]
    %v1574 = vld [vmem:[%s2 + $0x448] sm:$0xf]
    %v1575 = vld [vmem:[%s2 + $0x44c] sm:$0xf]
    %v1576 = vld [vmem:[%s2 + $0x450] sm:$0xf]
    %v1577 = vld [vmem:[%s2 + $0x454] sm:$0xf]
    %v1578 = vld [vmem:[%s2 + $0x458] sm:$0xf]
    %v1579 = vld [vmem:[%s2 + $0x45c] sm:$0xf]
    %v1580 = vld [vmem:[%s2 + $0x460] sm:$0xf]
    %v1581 = vld [vmem:[%s2 + $0x464] sm:$0xf]
    %v1582 = vld [vmem:[%s2 + $0x468] sm:$0xf]
    %v1583 = vld [vmem:[%s2 + $0x46c] sm:$0xf]
    %v1584 = vld [vmem:[%s2 + $0x470] sm:$0xf]
    %v1585 = vld [vmem:[%s2 + $0x474] sm:$0xf]
    %v1586 = vld [vmem:[%s2 + $0x478] sm:$0xf]
    %v1587 = vld [vmem:[%s2 + $0x47c] sm:$0xf]
    %v1588 = vld [vmem:[%s2 + $0x480] sm:$0xf]
    %v1589 = vld [vmem:[%s2 + $0x484] sm:$0xf]
    %v1590 = vld [vmem:[%s2 + $0x488] sm:$0xf]
    %v1591 = vld [vmem:[%s2 + $0x48c] sm:$0xf]
    %v1592 = vld [vmem:[%s2 + $0x490] sm:$0xf]
    %v1593 = vld [vmem:[%s2 + $0x494] sm:$0xf]
    %v1594 = vld [vmem:[%s2 + $0x498] sm:$0xf]
    %v1595 = vld [vmem:[%s2 + $0x49c] sm:$0xf]
    %v1596 = vld [vmem:[%s2 + $0x4a0] sm:$0xf]
    %v1597 = vld [vmem:[%s2 + $0x4a4] sm:$0xf]
    %v1598 = vld [vmem:[%s2 + $0x4a8] sm:$0xf]
    %v1599 = vld [vmem:[%s2 + $0x4ac] sm:$0xf]
    %v1600 = vld [vmem:[%s2 + $0x4b0] sm:$0xf]
    %v1601 = vld [vmem:[%s2 + $0x4b4] sm:$0xf]
    %v1602 = vld [vmem:[%s2 + $0x4b8] sm:$0xf]
    %v1603 = vld [vmem:[%s2 + $0x4bc] sm:$0xf]
    %v1604 = vld [vmem:[%s2 + $0x4c0] sm:$0xf]
    %v1605 = vld [vmem:[%s2 + $0x4c4] sm:$0xf]
    %v1606 = vld [vmem:[%s2 + $0x4c8] sm:$0xf]
    %v1607 = vld [vmem:[%s2 + $0x4cc] sm:$0xf]
    %v1608 = vld [vmem:[%s2 + $0x4d0] sm:$0xf]
    %v1609 = vld [vmem:[%s2 + $0x4d4] sm:$0xf]
    %v1610 = vld [vmem:[%s2 + $0x4d8] sm:$0xf]
    %v1611 = vld [vmem:[%s2 + $0x4dc] sm:$0xf]
    %v1612 = vld [vmem:[%s2 + $0x4e0] sm:$0xf]
    %v1613 = vld [vmem:[%s2 + $0x4e4] sm:$0xf]
    %v1614 = vld [vmem:[%s2 + $0x4e8] sm:$0xf]
    %v1615 = vld [vmem:[%s2 + $0x4ec] sm:$0xf]
    %v1616 = vld [vmem:[%s2 + $0x4f0] sm:$0xf]
    %v1617 = vld [vmem:[%s2 + $0x4f4] sm:$0xf]
    %v1618 = vld [vmem:[%s2 + $0x4f8] sm:$0xf]
    %v1619 = vld [vmem:[%s2 + $0x4fc] sm:$0xf]
    %v1620 = vld [vmem:[%s2 + $0x500] sm:$0xf]
    %v1621 = vld [vmem:[%s2 + $0x504] sm:$0xf]
    %v1622 = vld [vmem:[%s2 + $0x508] sm:$0xf]
    %v1623 = vld [vmem:[%s2 + $0x50c] sm:$0xf]
    %v1624 = vld [vmem:[%s2 + $0x510] sm:$0xf]
    %v1625 = vld [vmem:[%s2 + $0x514] sm:$0xf]
    %v1626 = vld [vmem:[%s2 + $0x518] sm:$0xf]
    %v1627 = vld [vmem:[%s2 + $0x51c] sm:$0xf]
    %v1628 = vld [vmem:[%s2 + $0x520] sm:$0xf]
    %v1629 = vld [vmem:[%s2 + $0x524] sm:$0xf]
    %v1630 = vld [vmem:[%s2 + $0x528] sm:$0xf]
    %v1631 = vld [vmem:[%s2 + $0x52c] sm:$0xf]
    %v1632 = vld [vmem:[%s2 + $0x530] sm:$0xf]
    %v1633 = vld [vmem:[%s2 + $0x534] sm:$0xf]
    %v1634 = vld [vmem:[%s2 + $0x538] sm:$0xf]
    %v1635 = vld [vmem:[%s2 + $0x53c] sm:$0xf]
    %v1636 = vld [vmem:[%s2 + $0x540] sm:$0xf]
    %v1637 = vld [vmem:[%s2 + $0x544] sm:$0xf]
    %v1638 = vld [vmem:[%s2 + $0x548] sm:$0xf]
    %v1639 = vld [vmem:[%s2 + $0x54c] sm:$0xf]
    %v1640 = vld [vmem:[%s2 + $0x550] sm:$0xf]
    %v1641 = vld [vmem:[%s2 + $0x554] sm:$0xf]
    %v1642 = vld [vmem:[%s2 + $0x558] sm:$0xf]
    %v1643 = vld [vmem:[%s2 + $0x55c] sm:$0xf]
    %v1644 = vld [vmem:[%s2 + $0x560] sm:$0xf]
    %v1645 = vld [vmem:[%s2 + $0x564] sm:$0xf]
    %v1646 = vld [vmem:[%s2 + $0x568] sm:$0xf]
    %v1647 = vld [vmem:[%s2 + $0x56c] sm:$0xf]
    %v1648 = vld [vmem:[%s2 + $0x570] sm:$0xf]
    %v1649 = vld [vmem:[%s2 + $0x574] sm:$0xf]
    %v1650 = vld [vmem:[%s2 + $0x578] sm:$0xf]
    %v1651 = vld [vmem:[%s2 + $0x57c] sm:$0xf]
    %v1652 = vld [vmem:[%s2 + $0x580] sm:$0xf]
    %v1653 = vld [vmem:[%s2 + $0x584] sm:$0xf]
    %v1654 = vld [vmem:[%s2 + $0x588] sm:$0xf]
    %v1655 = vld [vmem:[%s2 + $0x58c] sm:$0xf]
    %v1656 = vld [vmem:[%s2 + $0x590] sm:$0xf]
    %v1657 = vld [vmem:[%s2 + $0x594] sm:$0xf]
    %v1658 = vld [vmem:[%s2 + $0x598] sm:$0xf]
    %v1659 = vld [vmem:[%s2 + $0x59c] sm:$0xf]
    %v1660 = vld [vmem:[%s2 + $0x5a0] sm:$0xf]
    %v1661 = vld [vmem:[%s2 + $0x5a4] sm:$0xf]
    %v1662 = vld [vmem:[%s2 + $0x5a8] sm:$0xf]
    %v1663 = vld [vmem:[%s2 + $0x5ac] sm:$0xf]
    %v1664 = vld [vmem:[%s2 + $0x5b0] sm:$0xf]
    %v1665 = vld [vmem:[%s2 + $0x5b4] sm:$0xf]
    %v1666 = vld [vmem:[%s2 + $0x5b8] sm:$0xf]
    %v1667 = vld [vmem:[%s2 + $0x5bc] sm:$0xf]
    %v1668 = vld [vmem:[%s2 + $0x5c0] sm:$0xf]
    %v1669 = vld [vmem:[%s2 + $0x5c4] sm:$0xf]
    %v1670 = vld [vmem:[%s2 + $0x5c8] sm:$0xf]
    %v1671 = vld [vmem:[%s2 + $0x5cc] sm:$0xf]
    %v1672 = vld [vmem:[%s2 + $0x5d0] sm:$0xf]
    %v1673 = vld [vmem:[%s2 + $0x5d4] sm:$0xf]
    %v1674 = vld [vmem:[%s2 + $0x5d8] sm:$0xf]
    %v1675 = vld [vmem:[%s2 + $0x5dc] sm:$0xf]
    %v1676 = vld [vmem:[%s2 + $0x5e0] sm:$0xf]
    %v1677 = vld [vmem:[%s2 + $0x5e4] sm:$0xf]
    %v1678 = vld [vmem:[%s2 + $0x5e8] sm:$0xf]
    %v1679 = vld [vmem:[%s2 + $0x5ec] sm:$0xf]
    %v1680 = vld [vmem:[%s2 + $0x5f0] sm:$0xf]
    %v1681 = vld [vmem:[%s2 + $0x5f4] sm:$0xf]
    %v1682 = vld [vmem:[%s2 + $0x5f8] sm:$0xf]
    %v1683 = vld [vmem:[%s2 + $0x5fc] sm:$0xf]
    %v1684 = vld [vmem:[%s2 + $0x600] sm:$0xf]
    %v1685 = vld [vmem:[%s2 + $0x604] sm:$0xf]
    %v1686 = vld [vmem:[%s2 + $0x608] sm:$0xf]
    %v1687 = vld [vmem:[%s2 + $0x60c] sm:$0xf]
    %v1688 = vld [vmem:[%s2 + $0x610] sm:$0xf]
    %v1689 = vld [vmem:[%s2 + $0x614] sm:$0xf]
    %v1690 = vld [vmem:[%s2 + $0x618] sm:$0xf]
    %v1691 = vld [vmem:[%s2 + $0x61c] sm:$0xf]
    %v1692 = vld [vmem:[%s2 + $0x620] sm:$0xf]
    %v1693 = vld [vmem:[%s2 + $0x624] sm:$0xf]
    %v1694 = vld [vmem:[%s2 + $0x628] sm:$0xf]
    %v1695 = vld [vmem:[%s2 + $0x62c] sm:$0xf]
    %v1696 = vld [vmem:[%s2 + $0x630] sm:$0xf]
    %v1697 = vld [vmem:[%s2 + $0x634] sm:$0xf]
    %v1698 = vld [vmem:[%s2 + $0x638] sm:$0xf]
    %v1699 = vld [vmem:[%s2 + $0x63c] sm:$0xf]
    %v1700 = vld [vmem:[%s2 + $0x640] sm:$0xf]
    %v1701 = vld [vmem:[%s2 + $0x644] sm:$0xf]
    %v1702 = vld [vmem:[%s2 + $0x648] sm:$0xf]
    %v1703 = vld [vmem:[%s2 + $0x64c] sm:$0xf]
    %v1704 = vld [vmem:[%s2 + $0x650] sm:$0xf]
    %v1705 = vld [vmem:[%s2 + $0x654] sm:$0xf]
    %v1706 = vld [vmem:[%s2 + $0x658] sm:$0xf]
    %v1707 = vld [vmem:[%s2 + $0x65c] sm:$0xf]
    %v1708 = vld [vmem:[%s2 + $0x660] sm:$0xf]
    %v1709 = vld [vmem:[%s2 + $0x664] sm:$0xf]
    %v1710 = vld [vmem:[%s2 + $0x668] sm:$0xf]
    %v1711 = vld [vmem:[%s2 + $0x66c] sm:$0xf]
    %v1712 = vld [vmem:[%s2 + $0x670] sm:$0xf]
    %v1713 = vld [vmem:[%s2 + $0x674] sm:$0xf]
    %v1714 = vld [vmem:[%s2 + $0x678] sm:$0xf]
    %v1715 = vld [vmem:[%s2 + $0x67c] sm:$0xf]
    %v1716 = vld [vmem:[%s2 + $0x680] sm:$0xf]
    %v1717 = vld [vmem:[%s2 + $0x684] sm:$0xf]
    %v1718 = vld [vmem:[%s2 + $0x688] sm:$0xf]
    %v1719 = vld [vmem:[%s2 + $0x68c] sm:$0xf]
    %v1720 = vld [vmem:[%s2 + $0x690] sm:$0xf]
    %v1721 = vld [vmem:[%s2 + $0x694] sm:$0xf]
    %v1722 = vld [vmem:[%s2 + $0x698] sm:$0xf]
    %v1723 = vld [vmem:[%s2 + $0x69c] sm:$0xf]
    %v1724 = vld [vmem:[%s2 + $0x6a0] sm:$0xf]
    %v1725 = vld [vmem:[%s2 + $0x6a4] sm:$0xf]
    %v1726 = vld [vmem:[%s2 + $0x6a8] sm:$0xf]
    %v1727 = vld [vmem:[%s2 + $0x6ac] sm:$0xf]
    %v1728 = vld [vmem:[%s2 + $0x6b0] sm:$0xf]
    %v1729 = vld [vmem:[%s2 + $0x6b4] sm:$0xf]
    %v1730 = vld [vmem:[%s2 + $0x6b8] sm:$0xf]
    %v1731 = vld [vmem:[%s2 + $0x6bc] sm:$0xf]
    %v1732 = vld [vmem:[%s2 + $0x6c0] sm:$0xf]
    %v1733 = vld [vmem:[%s2 + $0x6c4] sm:$0xf]
    %v1734 = vld [vmem:[%s2 + $0x6c8] sm:$0xf]
    %v1735 = vld [vmem:[%s2 + $0x6cc] sm:$0xf]
    %v1736 = vld [vmem:[%s2 + $0x6d0] sm:$0xf]
    %v1737 = vld [vmem:[%s2 + $0x6d4] sm:$0xf]
    %v1738 = vld [vmem:[%s2 + $0x6d8] sm:$0xf]
    %v1739 = vld [vmem:[%s2 + $0x6dc] sm:$0xf]
    %v1740 = vld [vmem:[%s2 + $0x6e0] sm:$0xf]
    %v1741 = vld [vmem:[%s2 + $0x6e4] sm:$0xf]
    %v1742 = vld [vmem:[%s2 + $0x6e8] sm:$0xf]
    %v1743 = vld [vmem:[%s2 + $0x6ec] sm:$0xf]
    %v1744 = vld [vmem:[%s2 + $0x6f0] sm:$0xf]
    %v1745 = vld [vmem:[%s2 + $0x6f4] sm:$0xf]
    %v1746 = vld [vmem:[%s2 + $0x6f8] sm:$0xf]
    %v1747 = vld [vmem:[%s2 + $0x6fc] sm:$0xf]
    %v1748 = vld [vmem:[%s2 + $0x700] sm:$0xf]
    %v1749 = vld [vmem:[%s2 + $0x704] sm:$0xf]
    %v1750 = vld [vmem:[%s2 + $0x708] sm:$0xf]
    %v1751 = vld [vmem:[%s2 + $0x70c] sm:$0xf]
    %v1752 = vld [vmem:[%s2 + $0x710] sm:$0xf]
    %v1753 = vld [vmem:[%s2 + $0x714] sm:$0xf]
    %v1754 = vld [vmem:[%s2 + $0x718] sm:$0xf]
    %v1755 = vld [vmem:[%s2 + $0x71c] sm:$0xf]
    %v1756 = vld [vmem:[%s2 + $0x720] sm:$0xf]
    %v1757 = vld [vmem:[%s2 + $0x724] sm:$0xf]
    %v1758 = vld [vmem:[%s2 + $0x728] sm:$0xf]
    %v1759 = vld [vmem:[%s2 + $0x72c] sm:$0xf]
    %v1760 = vld [vmem:[%s2 + $0x730] sm:$0xf]
    %v1761 = vld [vmem:[%s2 + $0x734] sm:$0xf]
    %v1762 = vld [vmem:[%s2 + $0x738] sm:$0xf]
    %v1763 = vld [vmem:[%s2 + $0x73c] sm:$0xf]
    %v1764 = vld [vmem:[%s2 + $0x740] sm:$0xf]
    %v1765 = vld [vmem:[%s2 + $0x744] sm:$0xf]
    %v1766 = vld [vmem:[%s2 + $0x748] sm:$0xf]
    %v1767 = vld [vmem:[%s2 + $0x74c] sm:$0xf]
    %v1768 = vld [vmem:[%s2 + $0x750] sm:$0xf]
    %v1769 = vld [vmem:[%s2 + $0x754] sm:$0xf]
    %v1770 = vld [vmem:[%s2 + $0x758] sm:$0xf]
    %v1771 = vld [vmem:[%s2 + $0x75c] sm:$0xf]
    %v1772 = vld [vmem:[%s2 + $0x760] sm:$0xf]
    %v1773 = vld [vmem:[%s2 + $0x764] sm:$0xf]
    %v1774 = vld [vmem:[%s2 + $0x768] sm:$0xf]
    %v1775 = vld [vmem:[%s2 + $0x76c] sm:$0xf]
    %v1776 = vld [vmem:[%s2 + $0x770] sm:$0xf]
    %v1777 = vld [vmem:[%s2 + $0x774] sm:$0xf]
    %v1778 = vld [vmem:[%s2 + $0x778] sm:$0xf]
    %v1779 = vld [vmem:[%s2 + $0x77c] sm:$0xf]
    %v1780 = vld [vmem:[%s2 + $0x780] sm:$0xf]
    %v1781 = vld [vmem:[%s2 + $0x784] sm:$0xf]
    %v1782 = vld [vmem:[%s2 + $0x788] sm:$0xf]
    %v1783 = vld [vmem:[%s2 + $0x78c] sm:$0xf]
    %v1784 = vld [vmem:[%s2 + $0x790] sm:$0xf]
    %v1785 = vld [vmem:[%s2 + $0x794] sm:$0xf]
    %v1786 = vld [vmem:[%s2 + $0x798] sm:$0xf]
    %v1787 = vld [vmem:[%s2 + $0x79c] sm:$0xf]
    %v1788 = vld [vmem:[%s2 + $0x7a0] sm:$0xf]
    %v1789 = vld [vmem:[%s2 + $0x7a4] sm:$0xf]
    %v1790 = vld [vmem:[%s2 + $0x7a8] sm:$0xf]
    %v1791 = vld [vmem:[%s2 + $0x7ac] sm:$0xf]
    %v1792 = vld [vmem:[%s2 + $0x7b0] sm:$0xf]
    %v1793 = vld [vmem:[%s2 + $0x7b4] sm:$0xf]
    %v1794 = vld [vmem:[%s2 + $0x7b8] sm:$0xf]
    %v1795 = vld [vmem:[%s2 + $0x7bc] sm:$0xf]
    %v1796 = vld [vmem:[%s2 + $0x7c0] sm:$0xf]
    %v1797 = vld [vmem:[%s2 + $0x7c4] sm:$0xf]
    %v1798 = vld [vmem:[%s2 + $0x7c8] sm:$0xf]
    %v1799 = vld [vmem:[%s2 + $0x7cc] sm:$0xf]
    %v1800 = vld [vmem:[%s2 + $0x7d0] sm:$0xf]
    %v1801 = vld [vmem:[%s2 + $0x7d4] sm:$0xf]
    %v1802 = vld [vmem:[%s2 + $0x7d8] sm:$0xf]
    %v1803 = vld [vmem:[%s2 + $0x7dc] sm:$0xf]
    %v1804 = vld [vmem:[%s2 + $0x7e0] sm:$0xf]
    %v1805 = vld [vmem:[%s2 + $0x7e4] sm:$0xf]
    %v1806 = vld [vmem:[%s2 + $0x7e8] sm:$0xf]
    %v1807 = vld [vmem:[%s2 + $0x7ec] sm:$0xf]
    %v1808 = vld [vmem:[%s2 + $0x7f0] sm:$0xf]
    %v1809 = vld [vmem:[%s2 + $0x7f4] sm:$0xf]
    %v1810 = vld [vmem:[%s2 + $0x7f8] sm:$0xf]
    %v1811 = vld [vmem:[%s2 + $0x7fc] sm:$0xf]
    %v1812 = vld [vmem:[%s3] sm:$0x1]
    %v1814 = vperm.slane %v1812, 0
    %v2328 = vunpack.c.l.b16 %v1300
    %v2329 = vunpack.c.l.b16 %v1301
    %v2330 = vunpack.c.l.b16 %v1302
    %v2331 = vunpack.c.l.b16 %v1303
    %v2332 = vunpack.c.l.b16 %v1304
    %v2333 = vunpack.c.l.b16 %v1305
    %v2334 = vunpack.c.l.b16 %v1306
    %v2335 = vunpack.c.l.b16 %v1307
    %v2336 = vunpack.c.l.b16 %v1308
    %v2337 = vunpack.c.l.b16 %v1309
    %v2338 = vunpack.c.l.b16 %v1310
    %v2339 = vunpack.c.l.b16 %v1311
    %v2340 = vunpack.c.l.b16 %v1312
    %v2341 = vunpack.c.l.b16 %v1313
    %v2342 = vunpack.c.l.b16 %v1314
    %v2343 = vunpack.c.l.b16 %v1315
    %v2344 = vunpack.c.l.b16 %v1316
    %v2345 = vunpack.c.l.b16 %v1317
    %v2346 = vunpack.c.l.b16 %v1318
    %v2347 = vunpack.c.l.b16 %v1319
    %v2348 = vunpack.c.l.b16 %v1320
    %v2349 = vunpack.c.l.b16 %v1321
    %v2350 = vunpack.c.l.b16 %v1322
    %v2351 = vunpack.c.l.b16 %v1323
    %v2352 = vunpack.c.l.b16 %v1324
    %v2353 = vunpack.c.l.b16 %v1325
    %v2354 = vunpack.c.l.b16 %v1326
    %v2355 = vunpack.c.l.b16 %v1327
    %v2356 = vunpack.c.l.b16 %v1328
    %v2357 = vunpack.c.l.b16 %v1329
    %v2358 = vunpack.c.l.b16 %v1330
    %v2359 = vunpack.c.l.b16 %v1331
    %v2360 = vunpack.c.l.b16 %v1332
    %v2361 = vunpack.c.l.b16 %v1333
    %v2362 = vunpack.c.l.b16 %v1334
    %v2363 = vunpack.c.l.b16 %v1335
    %v2364 = vunpack.c.l.b16 %v1336
    %v2365 = vunpack.c.l.b16 %v1337
    %v2366 = vunpack.c.l.b16 %v1338
    %v2367 = vunpack.c.l.b16 %v1339
    %v2368 = vunpack.c.l.b16 %v1340
    %v2369 = vunpack.c.l.b16 %v1341
    %v2370 = vunpack.c.l.b16 %v1342
    %v2371 = vunpack.c.l.b16 %v1343
    %v2372 = vunpack.c.l.b16 %v1344
    %v2373 = vunpack.c.l.b16 %v1345
    %v2374 = vunpack.c.l.b16 %v1346
    %v2375 = vunpack.c.l.b16 %v1347
    %v2376 = vunpack.c.l.b16 %v1348
    %v2377 = vunpack.c.l.b16 %v1349
    %v2378 = vunpack.c.l.b16 %v1350
    %v2379 = vunpack.c.l.b16 %v1351
    %v2380 = vunpack.c.l.b16 %v1352
    %v2381 = vunpack.c.l.b16 %v1353
    %v2382 = vunpack.c.l.b16 %v1354
    %v2383 = vunpack.c.l.b16 %v1355
    %v2384 = vunpack.c.l.b16 %v1356
    %v2385 = vunpack.c.l.b16 %v1357
    %v2386 = vunpack.c.l.b16 %v1358
    %v2387 = vunpack.c.l.b16 %v1359
    %v2388 = vunpack.c.l.b16 %v1360
    %v2389 = vunpack.c.l.b16 %v1361
    %v2390 = vunpack.c.l.b16 %v1362
    %v2391 = vunpack.c.l.b16 %v1363
    %v2392 = vunpack.c.l.b16 %v1364
    %v2393 = vunpack.c.l.b16 %v1365
    %v2394 = vunpack.c.l.b16 %v1366
    %v2395 = vunpack.c.l.b16 %v1367
    %v2396 = vunpack.c.l.b16 %v1368
    %v2397 = vunpack.c.l.b16 %v1369
    %v2398 = vunpack.c.l.b16 %v1370
    %v2399 = vunpack.c.l.b16 %v1371
    %v2400 = vunpack.c.l.b16 %v1372
    %v2401 = vunpack.c.l.b16 %v1373
    %v2402 = vunpack.c.l.b16 %v1374
    %v2403 = vunpack.c.l.b16 %v1375
    %v2404 = vunpack.c.l.b16 %v1376
    %v2405 = vunpack.c.l.b16 %v1377
    %v2406 = vunpack.c.l.b16 %v1378
    %v2407 = vunpack.c.l.b16 %v1379
    %v2408 = vunpack.c.l.b16 %v1380
    %v2409 = vunpack.c.l.b16 %v1381
    %v2410 = vunpack.c.l.b16 %v1382
    %v2411 = vunpack.c.l.b16 %v1383
    %v2412 = vunpack.c.l.b16 %v1384
    %v2413 = vunpack.c.l.b16 %v1385
    %v2414 = vunpack.c.l.b16 %v1386
    %v2415 = vunpack.c.l.b16 %v1387
    %v2416 = vunpack.c.l.b16 %v1388
    %v2417 = vunpack.c.l.b16 %v1389
    %v2418 = vunpack.c.l.b16 %v1390
    %v2419 = vunpack.c.l.b16 %v1391
    %v2420 = vunpack.c.l.b16 %v1392
    %v2421 = vunpack.c.l.b16 %v1393
    %v2422 = vunpack.c.l.b16 %v1394
    %v2423 = vunpack.c.l.b16 %v1395
    %v2424 = vunpack.c.l.b16 %v1396
    %v2425 = vunpack.c.l.b16 %v1397
    %v2426 = vunpack.c.l.b16 %v1398
    %v2427 = vunpack.c.l.b16 %v1399
    %v2428 = vunpack.c.l.b16 %v1400
    %v2429 = vunpack.c.l.b16 %v1401
    %v2430 = vunpack.c.l.b16 %v1402
    %v2431 = vunpack.c.l.b16 %v1403
    %v2432 = vunpack.c.l.b16 %v1404
    %v2433 = vunpack.c.l.b16 %v1405
    %v2434 = vunpack.c.l.b16 %v1406
    %v2435 = vunpack.c.l.b16 %v1407
    %v2436 = vunpack.c.l.b16 %v1408
    %v2437 = vunpack.c.l.b16 %v1409
    %v2438 = vunpack.c.l.b16 %v1410
    %v2439 = vunpack.c.l.b16 %v1411
    %v2440 = vunpack.c.l.b16 %v1412
    %v2441 = vunpack.c.l.b16 %v1413
    %v2442 = vunpack.c.l.b16 %v1414
    %v2443 = vunpack.c.l.b16 %v1415
    %v2444 = vunpack.c.l.b16 %v1416
    %v2445 = vunpack.c.l.b16 %v1417
    %v2446 = vunpack.c.l.b16 %v1418
    %v2447 = vunpack.c.l.b16 %v1419
    %v2448 = vunpack.c.l.b16 %v1420
    %v2449 = vunpack.c.l.b16 %v1421
    %v2450 = vunpack.c.l.b16 %v1422
    %v2451 = vunpack.c.l.b16 %v1423
    %v2452 = vunpack.c.l.b16 %v1424
    %v2453 = vunpack.c.l.b16 %v1425
    %v2454 = vunpack.c.l.b16 %v1426
    %v2455 = vunpack.c.l.b16 %v1427
    %v2456 = vunpack.c.l.b16 %v1428
    %v2457 = vunpack.c.l.b16 %v1429
    %v2458 = vunpack.c.l.b16 %v1430
    %v2459 = vunpack.c.l.b16 %v1431
    %v2460 = vunpack.c.l.b16 %v1432
    %v2461 = vunpack.c.l.b16 %v1433
    %v2462 = vunpack.c.l.b16 %v1434
    %v2463 = vunpack.c.l.b16 %v1435
    %v2464 = vunpack.c.l.b16 %v1436
    %v2465 = vunpack.c.l.b16 %v1437
    %v2466 = vunpack.c.l.b16 %v1438
    %v2467 = vunpack.c.l.b16 %v1439
    %v2468 = vunpack.c.l.b16 %v1440
    %v2469 = vunpack.c.l.b16 %v1441
    %v2470 = vunpack.c.l.b16 %v1442
    %v2471 = vunpack.c.l.b16 %v1443
    %v2472 = vunpack.c.l.b16 %v1444
    %v2473 = vunpack.c.l.b16 %v1445
    %v2474 = vunpack.c.l.b16 %v1446
    %v2475 = vunpack.c.l.b16 %v1447
    %v2476 = vunpack.c.l.b16 %v1448
    %v2477 = vunpack.c.l.b16 %v1449
    %v2478 = vunpack.c.l.b16 %v1450
    %v2479 = vunpack.c.l.b16 %v1451
    %v2480 = vunpack.c.l.b16 %v1452
    %v2481 = vunpack.c.l.b16 %v1453
    %v2482 = vunpack.c.l.b16 %v1454
    %v2483 = vunpack.c.l.b16 %v1455
    %v2484 = vunpack.c.l.b16 %v1456
    %v2485 = vunpack.c.l.b16 %v1457
    %v2486 = vunpack.c.l.b16 %v1458
    %v2487 = vunpack.c.l.b16 %v1459
    %v2488 = vunpack.c.l.b16 %v1460
    %v2489 = vunpack.c.l.b16 %v1461
    %v2490 = vunpack.c.l.b16 %v1462
    %v2491 = vunpack.c.l.b16 %v1463
    %v2492 = vunpack.c.l.b16 %v1464
    %v2493 = vunpack.c.l.b16 %v1465
    %v2494 = vunpack.c.l.b16 %v1466
    %v2495 = vunpack.c.l.b16 %v1467
    %v2496 = vunpack.c.l.b16 %v1468
    %v2497 = vunpack.c.l.b16 %v1469
    %v2498 = vunpack.c.l.b16 %v1470
    %v2499 = vunpack.c.l.b16 %v1471
    %v2500 = vunpack.c.l.b16 %v1472
    %v2501 = vunpack.c.l.b16 %v1473
    %v2502 = vunpack.c.l.b16 %v1474
    %v2503 = vunpack.c.l.b16 %v1475
    %v2504 = vunpack.c.l.b16 %v1476
    %v2505 = vunpack.c.l.b16 %v1477
    %v2506 = vunpack.c.l.b16 %v1478
    %v2507 = vunpack.c.l.b16 %v1479
    %v2508 = vunpack.c.l.b16 %v1480
    %v2509 = vunpack.c.l.b16 %v1481
    %v2510 = vunpack.c.l.b16 %v1482
    %v2511 = vunpack.c.l.b16 %v1483
    %v2512 = vunpack.c.l.b16 %v1484
    %v2513 = vunpack.c.l.b16 %v1485
    %v2514 = vunpack.c.l.b16 %v1486
    %v2515 = vunpack.c.l.b16 %v1487
    %v2516 = vunpack.c.l.b16 %v1488
    %v2517 = vunpack.c.l.b16 %v1489
    %v2518 = vunpack.c.l.b16 %v1490
    %v2519 = vunpack.c.l.b16 %v1491
    %v2520 = vunpack.c.l.b16 %v1492
    %v2521 = vunpack.c.l.b16 %v1493
    %v2522 = vunpack.c.l.b16 %v1494
    %v2523 = vunpack.c.l.b16 %v1495
    %v2524 = vunpack.c.l.b16 %v1496
    %v2525 = vunpack.c.l.b16 %v1497
    %v2526 = vunpack.c.l.b16 %v1498
    %v2527 = vunpack.c.l.b16 %v1499
    %v2528 = vunpack.c.l.b16 %v1500
    %v2529 = vunpack.c.l.b16 %v1501
    %v2530 = vunpack.c.l.b16 %v1502
    %v2531 = vunpack.c.l.b16 %v1503
    %v2532 = vunpack.c.l.b16 %v1504
    %v2533 = vunpack.c.l.b16 %v1505
    %v2534 = vunpack.c.l.b16 %v1506
    %v2535 = vunpack.c.l.b16 %v1507
    %v2536 = vunpack.c.l.b16 %v1508
    %v2537 = vunpack.c.l.b16 %v1509
    %v2538 = vunpack.c.l.b16 %v1510
    %v2539 = vunpack.c.l.b16 %v1511
    %v2540 = vunpack.c.l.b16 %v1512
    %v2541 = vunpack.c.l.b16 %v1513
    %v2542 = vunpack.c.l.b16 %v1514
    %v2543 = vunpack.c.l.b16 %v1515
    %v2544 = vunpack.c.l.b16 %v1516
    %v2545 = vunpack.c.l.b16 %v1517
    %v2546 = vunpack.c.l.b16 %v1518
    %v2547 = vunpack.c.l.b16 %v1519
    %v2548 = vunpack.c.l.b16 %v1520
    %v2549 = vunpack.c.l.b16 %v1521
    %v2550 = vunpack.c.l.b16 %v1522
    %v2551 = vunpack.c.l.b16 %v1523
    %v2552 = vunpack.c.l.b16 %v1524
    %v2553 = vunpack.c.l.b16 %v1525
    %v2554 = vunpack.c.l.b16 %v1526
    %v2555 = vunpack.c.l.b16 %v1527
    %v2556 = vunpack.c.l.b16 %v1528
    %v2557 = vunpack.c.l.b16 %v1529
    %v2558 = vunpack.c.l.b16 %v1530
    %v2559 = vunpack.c.l.b16 %v1531
    %v2560 = vunpack.c.l.b16 %v1532
    %v2561 = vunpack.c.l.b16 %v1533
    %v2562 = vunpack.c.l.b16 %v1534
    %v2563 = vunpack.c.l.b16 %v1535
    %v2564 = vunpack.c.l.b16 %v1536
    %v2565 = vunpack.c.l.b16 %v1537
    %v2566 = vunpack.c.l.b16 %v1538
    %v2567 = vunpack.c.l.b16 %v1539
    %v2568 = vunpack.c.l.b16 %v1540
    %v2569 = vunpack.c.l.b16 %v1541
    %v2570 = vunpack.c.l.b16 %v1542
    %v2571 = vunpack.c.l.b16 %v1543
    %v2572 = vunpack.c.l.b16 %v1544
    %v2573 = vunpack.c.l.b16 %v1545
    %v2574 = vunpack.c.l.b16 %v1546
    %v2575 = vunpack.c.l.b16 %v1547
    %v2576 = vunpack.c.l.b16 %v1548
    %v2577 = vunpack.c.l.b16 %v1549
    %v2578 = vunpack.c.l.b16 %v1550
    %v2579 = vunpack.c.l.b16 %v1551
    %v2580 = vunpack.c.l.b16 %v1552
    %v2581 = vunpack.c.l.b16 %v1553
    %v2582 = vunpack.c.l.b16 %v1554
    %v2583 = vunpack.c.l.b16 %v1555
    %v2584 = vunpack.c.l.b16 %v1556
    %v2585 = vunpack.c.l.b16 %v1557
    %v2586 = vunpack.c.l.b16 %v1558
    %v2587 = vunpack.c.l.b16 %v1559
    %v2588 = vunpack.c.l.b16 %v1560
    %v2589 = vunpack.c.l.b16 %v1561
    %v2590 = vunpack.c.l.b16 %v1562
    %v2591 = vunpack.c.l.b16 %v1563
    %v2592 = vunpack.c.l.b16 %v1564
    %v2593 = vunpack.c.l.b16 %v1565
    %v2594 = vunpack.c.l.b16 %v1566
    %v2595 = vunpack.c.l.b16 %v1567
    %v2596 = vunpack.c.l.b16 %v1568
    %v2597 = vunpack.c.l.b16 %v1569
    %v2598 = vunpack.c.l.b16 %v1570
    %v2599 = vunpack.c.l.b16 %v1571
    %v2600 = vunpack.c.l.b16 %v1572
    %v2601 = vunpack.c.l.b16 %v1573
    %v2602 = vunpack.c.l.b16 %v1574
    %v2603 = vunpack.c.l.b16 %v1575
    %v2604 = vunpack.c.l.b16 %v1576
    %v2605 = vunpack.c.l.b16 %v1577
    %v2606 = vunpack.c.l.b16 %v1578
    %v2607 = vunpack.c.l.b16 %v1579
    %v2608 = vunpack.c.l.b16 %v1580
    %v2609 = vunpack.c.l.b16 %v1581
    %v2610 = vunpack.c.l.b16 %v1582
    %v2611 = vunpack.c.l.b16 %v1583
    %v2612 = vunpack.c.l.b16 %v1584
    %v2613 = vunpack.c.l.b16 %v1585
    %v2614 = vunpack.c.l.b16 %v1586
    %v2615 = vunpack.c.l.b16 %v1587
    %v2616 = vunpack.c.l.b16 %v1588
    %v2617 = vunpack.c.l.b16 %v1589
    %v2618 = vunpack.c.l.b16 %v1590
    %v2619 = vunpack.c.l.b16 %v1591
    %v2620 = vunpack.c.l.b16 %v1592
    %v2621 = vunpack.c.l.b16 %v1593
    %v2622 = vunpack.c.l.b16 %v1594
    %v2623 = vunpack.c.l.b16 %v1595
    %v2624 = vunpack.c.l.b16 %v1596
    %v2625 = vunpack.c.l.b16 %v1597
    %v2626 = vunpack.c.l.b16 %v1598
    %v2627 = vunpack.c.l.b16 %v1599
    %v2628 = vunpack.c.l.b16 %v1600
    %v2629 = vunpack.c.l.b16 %v1601
    %v2630 = vunpack.c.l.b16 %v1602
    %v2631 = vunpack.c.l.b16 %v1603
    %v2632 = vunpack.c.l.b16 %v1604
    %v2633 = vunpack.c.l.b16 %v1605
    %v2634 = vunpack.c.l.b16 %v1606
    %v2635 = vunpack.c.l.b16 %v1607
    %v2636 = vunpack.c.l.b16 %v1608
    %v2637 = vunpack.c.l.b16 %v1609
    %v2638 = vunpack.c.l.b16 %v1610
    %v2639 = vunpack.c.l.b16 %v1611
    %v2640 = vunpack.c.l.b16 %v1612
    %v2641 = vunpack.c.l.b16 %v1613
    %v2642 = vunpack.c.l.b16 %v1614
    %v2643 = vunpack.c.l.b16 %v1615
    %v2644 = vunpack.c.l.b16 %v1616
    %v2645 = vunpack.c.l.b16 %v1617
    %v2646 = vunpack.c.l.b16 %v1618
    %v2647 = vunpack.c.l.b16 %v1619
    %v2648 = vunpack.c.l.b16 %v1620
    %v2649 = vunpack.c.l.b16 %v1621
    %v2650 = vunpack.c.l.b16 %v1622
    %v2651 = vunpack.c.l.b16 %v1623
    %v2652 = vunpack.c.l.b16 %v1624
    %v2653 = vunpack.c.l.b16 %v1625
    %v2654 = vunpack.c.l.b16 %v1626
    %v2655 = vunpack.c.l.b16 %v1627
    %v2656 = vunpack.c.l.b16 %v1628
    %v2657 = vunpack.c.l.b16 %v1629
    %v2658 = vunpack.c.l.b16 %v1630
    %v2659 = vunpack.c.l.b16 %v1631
    %v2660 = vunpack.c.l.b16 %v1632
    %v2661 = vunpack.c.l.b16 %v1633
    %v2662 = vunpack.c.l.b16 %v1634
    %v2663 = vunpack.c.l.b16 %v1635
    %v2664 = vunpack.c.l.b16 %v1636
    %v2665 = vunpack.c.l.b16 %v1637
    %v2666 = vunpack.c.l.b16 %v1638
    %v2667 = vunpack.c.l.b16 %v1639
    %v2668 = vunpack.c.l.b16 %v1640
    %v2669 = vunpack.c.l.b16 %v1641
    %v2670 = vunpack.c.l.b16 %v1642
    %v2671 = vunpack.c.l.b16 %v1643
    %v2672 = vunpack.c.l.b16 %v1644
    %v2673 = vunpack.c.l.b16 %v1645
    %v2674 = vunpack.c.l.b16 %v1646
    %v2675 = vunpack.c.l.b16 %v1647
    %v2676 = vunpack.c.l.b16 %v1648
    %v2677 = vunpack.c.l.b16 %v1649
    %v2678 = vunpack.c.l.b16 %v1650
    %v2679 = vunpack.c.l.b16 %v1651
    %v2680 = vunpack.c.l.b16 %v1652
    %v2681 = vunpack.c.l.b16 %v1653
    %v2682 = vunpack.c.l.b16 %v1654
    %v2683 = vunpack.c.l.b16 %v1655
    %v2684 = vunpack.c.l.b16 %v1656
    %v2685 = vunpack.c.l.b16 %v1657
    %v2686 = vunpack.c.l.b16 %v1658
    %v2687 = vunpack.c.l.b16 %v1659
    %v2688 = vunpack.c.l.b16 %v1660
    %v2689 = vunpack.c.l.b16 %v1661
    %v2690 = vunpack.c.l.b16 %v1662
    %v2691 = vunpack.c.l.b16 %v1663
    %v2692 = vunpack.c.l.b16 %v1664
    %v2693 = vunpack.c.l.b16 %v1665
    %v2694 = vunpack.c.l.b16 %v1666
    %v2695 = vunpack.c.l.b16 %v1667
    %v2696 = vunpack.c.l.b16 %v1668
    %v2697 = vunpack.c.l.b16 %v1669
    %v2698 = vunpack.c.l.b16 %v1670
    %v2699 = vunpack.c.l.b16 %v1671
    %v2700 = vunpack.c.l.b16 %v1672
    %v2701 = vunpack.c.l.b16 %v1673
    %v2702 = vunpack.c.l.b16 %v1674
    %v2703 = vunpack.c.l.b16 %v1675
    %v2704 = vunpack.c.l.b16 %v1676
    %v2705 = vunpack.c.l.b16 %v1677
    %v2706 = vunpack.c.l.b16 %v1678
    %v2707 = vunpack.c.l.b16 %v1679
    %v2708 = vunpack.c.l.b16 %v1680
    %v2709 = vunpack.c.l.b16 %v1681
    %v2710 = vunpack.c.l.b16 %v1682
    %v2711 = vunpack.c.l.b16 %v1683
    %v2712 = vunpack.c.l.b16 %v1684
    %v2713 = vunpack.c.l.b16 %v1685
    %v2714 = vunpack.c.l.b16 %v1686
    %v2715 = vunpack.c.l.b16 %v1687
    %v2716 = vunpack.c.l.b16 %v1688
    %v2717 = vunpack.c.l.b16 %v1689
    %v2718 = vunpack.c.l.b16 %v1690
    %v2719 = vunpack.c.l.b16 %v1691
    %v2720 = vunpack.c.l.b16 %v1692
    %v2721 = vunpack.c.l.b16 %v1693
    %v2722 = vunpack.c.l.b16 %v1694
    %v2723 = vunpack.c.l.b16 %v1695
    %v2724 = vunpack.c.l.b16 %v1696
    %v2725 = vunpack.c.l.b16 %v1697
    %v2726 = vunpack.c.l.b16 %v1698
    %v2727 = vunpack.c.l.b16 %v1699
    %v2728 = vunpack.c.l.b16 %v1700
    %v2729 = vunpack.c.l.b16 %v1701
    %v2730 = vunpack.c.l.b16 %v1702
    %v2731 = vunpack.c.l.b16 %v1703
    %v2732 = vunpack.c.l.b16 %v1704
    %v2733 = vunpack.c.l.b16 %v1705
    %v2734 = vunpack.c.l.b16 %v1706
    %v2735 = vunpack.c.l.b16 %v1707
    %v2736 = vunpack.c.l.b16 %v1708
    %v2737 = vunpack.c.l.b16 %v1709
    %v2738 = vunpack.c.l.b16 %v1710
    %v2739 = vunpack.c.l.b16 %v1711
    %v2740 = vunpack.c.l.b16 %v1712
    %v2741 = vunpack.c.l.b16 %v1713
    %v2742 = vunpack.c.l.b16 %v1714
    %v2743 = vunpack.c.l.b16 %v1715
    %v2744 = vunpack.c.l.b16 %v1716
    %v2745 = vunpack.c.l.b16 %v1717
    %v2746 = vunpack.c.l.b16 %v1718
    %v2747 = vunpack.c.l.b16 %v1719
    %v2748 = vunpack.c.l.b16 %v1720
    %v2749 = vunpack.c.l.b16 %v1721
    %v2750 = vunpack.c.l.b16 %v1722
    %v2751 = vunpack.c.l.b16 %v1723
    %v2752 = vunpack.c.l.b16 %v1724
    %v2753 = vunpack.c.l.b16 %v1725
    %v2754 = vunpack.c.l.b16 %v1726
    %v2755 = vunpack.c.l.b16 %v1727
    %v2756 = vunpack.c.l.b16 %v1728
    %v2757 = vunpack.c.l.b16 %v1729
    %v2758 = vunpack.c.l.b16 %v1730
    %v2759 = vunpack.c.l.b16 %v1731
    %v2760 = vunpack.c.l.b16 %v1732
    %v2761 = vunpack.c.l.b16 %v1733
    %v2762 = vunpack.c.l.b16 %v1734
    %v2763 = vunpack.c.l.b16 %v1735
    %v2764 = vunpack.c.l.b16 %v1736
    %v2765 = vunpack.c.l.b16 %v1737
    %v2766 = vunpack.c.l.b16 %v1738
    %v2767 = vunpack.c.l.b16 %v1739
    %v2768 = vunpack.c.l.b16 %v1740
    %v2769 = vunpack.c.l.b16 %v1741
    %v2770 = vunpack.c.l.b16 %v1742
    %v2771 = vunpack.c.l.b16 %v1743
    %v2772 = vunpack.c.l.b16 %v1744
    %v2773 = vunpack.c.l.b16 %v1745
    %v2774 = vunpack.c.l.b16 %v1746
    %v2775 = vunpack.c.l.b16 %v1747
    %v2776 = vunpack.c.l.b16 %v1748
    %v2777 = vunpack.c.l.b16 %v1749
    %v2778 = vunpack.c.l.b16 %v1750
    %v2779 = vunpack.c.l.b16 %v1751
    %v2780 = vunpack.c.l.b16 %v1752
    %v2781 = vunpack.c.l.b16 %v1753
    %v2782 = vunpack.c.l.b16 %v1754
    %v2783 = vunpack.c.l.b16 %v1755
    %v2784 = vunpack.c.l.b16 %v1756
    %v2785 = vunpack.c.l.b16 %v1757
    %v2786 = vunpack.c.l.b16 %v1758
    %v2787 = vunpack.c.l.b16 %v1759
    %v2788 = vunpack.c.l.b16 %v1760
    %v2789 = vunpack.c.l.b16 %v1761
    %v2790 = vunpack.c.l.b16 %v1762
    %v2791 = vunpack.c.l.b16 %v1763
    %v2792 = vunpack.c.l.b16 %v1764
    %v2793 = vunpack.c.l.b16 %v1765
    %v2794 = vunpack.c.l.b16 %v1766
    %v2795 = vunpack.c.l.b16 %v1767
    %v2796 = vunpack.c.l.b16 %v1768
    %v2797 = vunpack.c.l.b16 %v1769
    %v2798 = vunpack.c.l.b16 %v1770
    %v2799 = vunpack.c.l.b16 %v1771
    %v2800 = vunpack.c.l.b16 %v1772
    %v2801 = vunpack.c.l.b16 %v1773
    %v2802 = vunpack.c.l.b16 %v1774
    %v2803 = vunpack.c.l.b16 %v1775
    %v2804 = vunpack.c.l.b16 %v1776
    %v2805 = vunpack.c.l.b16 %v1777
    %v2806 = vunpack.c.l.b16 %v1778
    %v2807 = vunpack.c.l.b16 %v1779
    %v2808 = vunpack.c.l.b16 %v1780
    %v2809 = vunpack.c.l.b16 %v1781
    %v2810 = vunpack.c.l.b16 %v1782
    %v2811 = vunpack.c.l.b16 %v1783
    %v2812 = vunpack.c.l.b16 %v1784
    %v2813 = vunpack.c.l.b16 %v1785
    %v2814 = vunpack.c.l.b16 %v1786
    %v2815 = vunpack.c.l.b16 %v1787
    %v2816 = vunpack.c.l.b16 %v1788
    %v2817 = vunpack.c.l.b16 %v1789
    %v2818 = vunpack.c.l.b16 %v1790
    %v2819 = vunpack.c.l.b16 %v1791
    %v2820 = vunpack.c.l.b16 %v1792
    %v2821 = vunpack.c.l.b16 %v1793
    %v2822 = vunpack.c.l.b16 %v1794
    %v2823 = vunpack.c.l.b16 %v1795
    %v2824 = vunpack.c.l.b16 %v1796
    %v2825 = vunpack.c.l.b16 %v1797
    %v2826 = vunpack.c.l.b16 %v1798
    %v2827 = vunpack.c.l.b16 %v1799
    %v2828 = vunpack.c.l.b16 %v1800
    %v2829 = vunpack.c.l.b16 %v1801
    %v2830 = vunpack.c.l.b16 %v1802
    %v2831 = vunpack.c.l.b16 %v1803
    %v2832 = vunpack.c.l.b16 %v1804
    %v2833 = vunpack.c.l.b16 %v1805
    %v2834 = vunpack.c.l.b16 %v1806
    %v2835 = vunpack.c.l.b16 %v1807
    %v2836 = vunpack.c.l.b16 %v1808
    %v2837 = vunpack.c.l.b16 %v1809
    %v2838 = vunpack.c.l.b16 %v1810
    %v2839 = vunpack.c.l.b16 %v1811
    %v2840 = vpack.c.b16 %v2329, %v2328
    %v2841 = vpack.c.b16 %v2331, %v2330
    %v2842 = vpack.c.b16 %v2333, %v2332
    %v2843 = vpack.c.b16 %v2335, %v2334
    %v2844 = vpack.c.b16 %v2337, %v2336
    %v2845 = vpack.c.b16 %v2339, %v2338
    %v2846 = vpack.c.b16 %v2341, %v2340
    %v2847 = vpack.c.b16 %v2343, %v2342
    %v2848 = vpack.c.b16 %v2345, %v2344
    %v2849 = vpack.c.b16 %v2347, %v2346
    %v2850 = vpack.c.b16 %v2349, %v2348
    %v2851 = vpack.c.b16 %v2351, %v2350
    %v2852 = vpack.c.b16 %v2353, %v2352
    %v2853 = vpack.c.b16 %v2355, %v2354
    %v2854 = vpack.c.b16 %v2357, %v2356
    %v2855 = vpack.c.b16 %v2359, %v2358
    %v2856 = vpack.c.b16 %v2361, %v2360
    %v2857 = vpack.c.b16 %v2363, %v2362
    %v2858 = vpack.c.b16 %v2365, %v2364
    %v2859 = vpack.c.b16 %v2367, %v2366
    %v2860 = vpack.c.b16 %v2369, %v2368
    %v2861 = vpack.c.b16 %v2371, %v2370
    %v2862 = vpack.c.b16 %v2373, %v2372
    %v2863 = vpack.c.b16 %v2375, %v2374
    %v2864 = vpack.c.b16 %v2377, %v2376
    %v2865 = vpack.c.b16 %v2379, %v2378
    %v2866 = vpack.c.b16 %v2381, %v2380
    %v2867 = vpack.c.b16 %v2383, %v2382
    %v2868 = vpack.c.b16 %v2385, %v2384
    %v2869 = vpack.c.b16 %v2387, %v2386
    %v2870 = vpack.c.b16 %v2389, %v2388
    %v2871 = vpack.c.b16 %v2391, %v2390
    %v2872 = vpack.c.b16 %v2393, %v2392
    %v2873 = vpack.c.b16 %v2395, %v2394
    %v2874 = vpack.c.b16 %v2397, %v2396
    %v2875 = vpack.c.b16 %v2399, %v2398
    %v2876 = vpack.c.b16 %v2401, %v2400
    %v2877 = vpack.c.b16 %v2403, %v2402
    %v2878 = vpack.c.b16 %v2405, %v2404
    %v2879 = vpack.c.b16 %v2407, %v2406
    %v2880 = vpack.c.b16 %v2409, %v2408
    %v2881 = vpack.c.b16 %v2411, %v2410
    %v2882 = vpack.c.b16 %v2413, %v2412
    %v2883 = vpack.c.b16 %v2415, %v2414
    %v2884 = vpack.c.b16 %v2417, %v2416
    %v2885 = vpack.c.b16 %v2419, %v2418
    %v2886 = vpack.c.b16 %v2421, %v2420
    %v2887 = vpack.c.b16 %v2423, %v2422
    %v2888 = vpack.c.b16 %v2425, %v2424
    %v2889 = vpack.c.b16 %v2427, %v2426
    %v2890 = vpack.c.b16 %v2429, %v2428
    %v2891 = vpack.c.b16 %v2431, %v2430
    %v2892 = vpack.c.b16 %v2433, %v2432
    %v2893 = vpack.c.b16 %v2435, %v2434
    %v2894 = vpack.c.b16 %v2437, %v2436
    %v2895 = vpack.c.b16 %v2439, %v2438
    %v2896 = vpack.c.b16 %v2441, %v2440
    %v2897 = vpack.c.b16 %v2443, %v2442
    %v2898 = vpack.c.b16 %v2445, %v2444
    %v2899 = vpack.c.b16 %v2447, %v2446
    %v2900 = vpack.c.b16 %v2449, %v2448
    %v2901 = vpack.c.b16 %v2451, %v2450
    %v2902 = vpack.c.b16 %v2453, %v2452
    %v2903 = vpack.c.b16 %v2455, %v2454
    %v2904 = vpack.c.b16 %v2457, %v2456
    %v2905 = vpack.c.b16 %v2459, %v2458
    %v2906 = vpack.c.b16 %v2461, %v2460
    %v2907 = vpack.c.b16 %v2463, %v2462
    %v2908 = vpack.c.b16 %v2465, %v2464
    %v2909 = vpack.c.b16 %v2467, %v2466
    %v2910 = vpack.c.b16 %v2469, %v2468
    %v2911 = vpack.c.b16 %v2471, %v2470
    %v2912 = vpack.c.b16 %v2473, %v2472
    %v2913 = vpack.c.b16 %v2475, %v2474
    %v2914 = vpack.c.b16 %v2477, %v2476
    %v2915 = vpack.c.b16 %v2479, %v2478
    %v2916 = vpack.c.b16 %v2481, %v2480
    %v2917 = vpack.c.b16 %v2483, %v2482
    %v2918 = vpack.c.b16 %v2485, %v2484
    %v2919 = vpack.c.b16 %v2487, %v2486
    %v2920 = vpack.c.b16 %v2489, %v2488
    %v2921 = vpack.c.b16 %v2491, %v2490
    %v2922 = vpack.c.b16 %v2493, %v2492
    %v2923 = vpack.c.b16 %v2495, %v2494
    %v2924 = vpack.c.b16 %v2497, %v2496
    %v2925 = vpack.c.b16 %v2499, %v2498
    %v2926 = vpack.c.b16 %v2501, %v2500
    %v2927 = vpack.c.b16 %v2503, %v2502
    %v2928 = vpack.c.b16 %v2505, %v2504
    %v2929 = vpack.c.b16 %v2507, %v2506
    %v2930 = vpack.c.b16 %v2509, %v2508
    %v2931 = vpack.c.b16 %v2511, %v2510
    %v2932 = vpack.c.b16 %v2513, %v2512
    %v2933 = vpack.c.b16 %v2515, %v2514
    %v2934 = vpack.c.b16 %v2517, %v2516
    %v2935 = vpack.c.b16 %v2519, %v2518
    %v2936 = vpack.c.b16 %v2521, %v2520
    %v2937 = vpack.c.b16 %v2523, %v2522
    %v2938 = vpack.c.b16 %v2525, %v2524
    %v2939 = vpack.c.b16 %v2527, %v2526
    %v2940 = vpack.c.b16 %v2529, %v2528
    %v2941 = vpack.c.b16 %v2531, %v2530
    %v2942 = vpack.c.b16 %v2533, %v2532
    %v2943 = vpack.c.b16 %v2535, %v2534
    %v2944 = vpack.c.b16 %v2537, %v2536
    %v2945 = vpack.c.b16 %v2539, %v2538
    %v2946 = vpack.c.b16 %v2541, %v2540
    %v2947 = vpack.c.b16 %v2543, %v2542
    %v2948 = vpack.c.b16 %v2545, %v2544
    %v2949 = vpack.c.b16 %v2547, %v2546
    %v2950 = vpack.c.b16 %v2549, %v2548
    %v2951 = vpack.c.b16 %v2551, %v2550
    %v2952 = vpack.c.b16 %v2553, %v2552
    %v2953 = vpack.c.b16 %v2555, %v2554
    %v2954 = vpack.c.b16 %v2557, %v2556
    %v2955 = vpack.c.b16 %v2559, %v2558
    %v2956 = vpack.c.b16 %v2561, %v2560
    %v2957 = vpack.c.b16 %v2563, %v2562
    %v2958 = vpack.c.b16 %v2565, %v2564
    %v2959 = vpack.c.b16 %v2567, %v2566
    %v2960 = vpack.c.b16 %v2569, %v2568
    %v2961 = vpack.c.b16 %v2571, %v2570
    %v2962 = vpack.c.b16 %v2573, %v2572
    %v2963 = vpack.c.b16 %v2575, %v2574
    %v2964 = vpack.c.b16 %v2577, %v2576
    %v2965 = vpack.c.b16 %v2579, %v2578
    %v2966 = vpack.c.b16 %v2581, %v2580
    %v2967 = vpack.c.b16 %v2583, %v2582
    %v2968 = vpack.c.b16 %v2585, %v2584
    %v2969 = vpack.c.b16 %v2587, %v2586
    %v2970 = vpack.c.b16 %v2589, %v2588
    %v2971 = vpack.c.b16 %v2591, %v2590
    %v2972 = vpack.c.b16 %v2593, %v2592
    %v2973 = vpack.c.b16 %v2595, %v2594
    %v2974 = vpack.c.b16 %v2597, %v2596
    %v2975 = vpack.c.b16 %v2599, %v2598
    %v2976 = vpack.c.b16 %v2601, %v2600
    %v2977 = vpack.c.b16 %v2603, %v2602
    %v2978 = vpack.c.b16 %v2605, %v2604
    %v2979 = vpack.c.b16 %v2607, %v2606
    %v2980 = vpack.c.b16 %v2609, %v2608
    %v2981 = vpack.c.b16 %v2611, %v2610
    %v2982 = vpack.c.b16 %v2613, %v2612
    %v2983 = vpack.c.b16 %v2615, %v2614
    %v2984 = vpack.c.b16 %v2617, %v2616
    %v2985 = vpack.c.b16 %v2619, %v2618
    %v2986 = vpack.c.b16 %v2621, %v2620
    %v2987 = vpack.c.b16 %v2623, %v2622
    %v2988 = vpack.c.b16 %v2625, %v2624
    %v2989 = vpack.c.b16 %v2627, %v2626
    %v2990 = vpack.c.b16 %v2629, %v2628
    %v2991 = vpack.c.b16 %v2631, %v2630
    %v2992 = vpack.c.b16 %v2633, %v2632
    %v2993 = vpack.c.b16 %v2635, %v2634
    %v2994 = vpack.c.b16 %v2637, %v2636
    %v2995 = vpack.c.b16 %v2639, %v2638
    %v2996 = vpack.c.b16 %v2641, %v2640
    %v2997 = vpack.c.b16 %v2643, %v2642
    %v2998 = vpack.c.b16 %v2645, %v2644
    %v2999 = vpack.c.b16 %v2647, %v2646
    %v3000 = vpack.c.b16 %v2649, %v2648
    %v3001 = vpack.c.b16 %v2651, %v2650
    %v3002 = vpack.c.b16 %v2653, %v2652
    %v3003 = vpack.c.b16 %v2655, %v2654
    %v3004 = vpack.c.b16 %v2657, %v2656
    %v3005 = vpack.c.b16 %v2659, %v2658
    %v3006 = vpack.c.b16 %v2661, %v2660
    %v3007 = vpack.c.b16 %v2663, %v2662
    %v3008 = vpack.c.b16 %v2665, %v2664
    %v3009 = vpack.c.b16 %v2667, %v2666
    %v3010 = vpack.c.b16 %v2669, %v2668
    %v3011 = vpack.c.b16 %v2671, %v2670
    %v3012 = vpack.c.b16 %v2673, %v2672
    %v3013 = vpack.c.b16 %v2675, %v2674
    %v3014 = vpack.c.b16 %v2677, %v2676
    %v3015 = vpack.c.b16 %v2679, %v2678
    %v3016 = vpack.c.b16 %v2681, %v2680
    %v3017 = vpack.c.b16 %v2683, %v2682
    %v3018 = vpack.c.b16 %v2685, %v2684
    %v3019 = vpack.c.b16 %v2687, %v2686
    %v3020 = vpack.c.b16 %v2689, %v2688
    %v3021 = vpack.c.b16 %v2691, %v2690
    %v3022 = vpack.c.b16 %v2693, %v2692
    %v3023 = vpack.c.b16 %v2695, %v2694
    %v3024 = vpack.c.b16 %v2697, %v2696
    %v3025 = vpack.c.b16 %v2699, %v2698
    %v3026 = vpack.c.b16 %v2701, %v2700
    %v3027 = vpack.c.b16 %v2703, %v2702
    %v3028 = vpack.c.b16 %v2705, %v2704
    %v3029 = vpack.c.b16 %v2707, %v2706
    %v3030 = vpack.c.b16 %v2709, %v2708
    %v3031 = vpack.c.b16 %v2711, %v2710
    %v3032 = vpack.c.b16 %v2713, %v2712
    %v3033 = vpack.c.b16 %v2715, %v2714
    %v3034 = vpack.c.b16 %v2717, %v2716
    %v3035 = vpack.c.b16 %v2719, %v2718
    %v3036 = vpack.c.b16 %v2721, %v2720
    %v3037 = vpack.c.b16 %v2723, %v2722
    %v3038 = vpack.c.b16 %v2725, %v2724
    %v3039 = vpack.c.b16 %v2727, %v2726
    %v3040 = vpack.c.b16 %v2729, %v2728
    %v3041 = vpack.c.b16 %v2731, %v2730
    %v3042 = vpack.c.b16 %v2733, %v2732
    %v3043 = vpack.c.b16 %v2735, %v2734
    %v3044 = vpack.c.b16 %v2737, %v2736
    %v3045 = vpack.c.b16 %v2739, %v2738
    %v3046 = vpack.c.b16 %v2741, %v2740
    %v3047 = vpack.c.b16 %v2743, %v2742
    %v3048 = vpack.c.b16 %v2745, %v2744
    %v3049 = vpack.c.b16 %v2747, %v2746
    %v3050 = vpack.c.b16 %v2749, %v2748
    %v3051 = vpack.c.b16 %v2751, %v2750
    %v3052 = vpack.c.b16 %v2753, %v2752
    %v3053 = vpack.c.b16 %v2755, %v2754
    %v3054 = vpack.c.b16 %v2757, %v2756
    %v3055 = vpack.c.b16 %v2759, %v2758
    %v3056 = vpack.c.b16 %v2761, %v2760
    %v3057 = vpack.c.b16 %v2763, %v2762
    %v3058 = vpack.c.b16 %v2765, %v2764
    %v3059 = vpack.c.b16 %v2767, %v2766
    %v3060 = vpack.c.b16 %v2769, %v2768
    %v3061 = vpack.c.b16 %v2771, %v2770
    %v3062 = vpack.c.b16 %v2773, %v2772
    %v3063 = vpack.c.b16 %v2775, %v2774
    %v3064 = vpack.c.b16 %v2777, %v2776
    %v3065 = vpack.c.b16 %v2779, %v2778
    %v3066 = vpack.c.b16 %v2781, %v2780
    %v3067 = vpack.c.b16 %v2783, %v2782
    %v3068 = vpack.c.b16 %v2785, %v2784
    %v3069 = vpack.c.b16 %v2787, %v2786
    %v3070 = vpack.c.b16 %v2789, %v2788
    %v3071 = vpack.c.b16 %v2791, %v2790
    %v3072 = vpack.c.b16 %v2793, %v2792
    %v3073 = vpack.c.b16 %v2795, %v2794
    %v3074 = vpack.c.b16 %v2797, %v2796
    %v3075 = vpack.c.b16 %v2799, %v2798
    %v3076 = vpack.c.b16 %v2801, %v2800
    %v3077 = vpack.c.b16 %v2803, %v2802
    %v3078 = vpack.c.b16 %v2805, %v2804
    %v3079 = vpack.c.b16 %v2807, %v2806
    %v3080 = vpack.c.b16 %v2809, %v2808
    %v3081 = vpack.c.b16 %v2811, %v2810
    %v3082 = vpack.c.b16 %v2813, %v2812
    %v3083 = vpack.c.b16 %v2815, %v2814
    %v3084 = vpack.c.b16 %v2817, %v2816
    %v3085 = vpack.c.b16 %v2819, %v2818
    %v3086 = vpack.c.b16 %v2821, %v2820
    %v3087 = vpack.c.b16 %v2823, %v2822
    %v3088 = vpack.c.b16 %v2825, %v2824
    %v3089 = vpack.c.b16 %v2827, %v2826
    %v3090 = vpack.c.b16 %v2829, %v2828
    %v3091 = vpack.c.b16 %v2831, %v2830
    %v3092 = vpack.c.b16 %v2833, %v2832
    %v3093 = vpack.c.b16 %v2835, %v2834
    %v3094 = vpack.c.b16 %v2837, %v2836
    %v3095 = vpack.c.b16 %v2839, %v2838
    %3352 = vmatpush.bf16.msra.mxu0 %v2847
    %3353 = vmatpush.bf16.msra.mxu0 %v2846
    %3354 = vmatpush.bf16.msra.mxu0 %v2845
    %3355 = vmatpush.bf16.msra.mxu0 %v2844
    %3356 = vmatpush.bf16.msra.mxu0 %v2843
    %3357 = vmatpush.bf16.msra.mxu0 %v2842
    %3358 = vmatpush.bf16.msra.mxu0 %v2841
    %3359 = vmatpush.bf16.msra.mxu0 %v2840
    %3360 = vmatmul.bf16.gmra.mxu0 %v1268
    %v3361 = vpop.f32.mrf.mxu0
    %v3362 = vadd.f32 %v1814, %v3361
    %v3363 = vpop.f32.mrf.mxu0
    %3364 = vdwg.mxu0
    %3365 = vmatpush.bf16.msra.mxu0 %v2855
    %3366 = vmatpush.bf16.msra.mxu0 %v2854
    %3367 = vmatpush.bf16.msra.mxu0 %v2853
    %3368 = vmatpush.bf16.msra.mxu0 %v2852
    %3369 = vmatpush.bf16.msra.mxu0 %v2851
    %3370 = vmatpush.bf16.msra.mxu0 %v2850
    %3371 = vmatpush.bf16.msra.mxu0 %v2849
    %3372 = vmatpush.bf16.msra.mxu0 %v2848
    %3373 = vmatmul.bf16.gmra.mxu0 %v1269
    %v3374 = vpop.f32.mrf.mxu0
    %v3375 = vadd.f32 %v3362, %v3374
    %v3376 = vpop.f32.mrf.mxu0
    %3377 = vdwg.mxu0
    %3378 = vmatpush.bf16.msra.mxu0 %v2863
    %3379 = vmatpush.bf16.msra.mxu0 %v2862
    %3380 = vmatpush.bf16.msra.mxu0 %v2861
    %3381 = vmatpush.bf16.msra.mxu0 %v2860
    %3382 = vmatpush.bf16.msra.mxu0 %v2859
    %3383 = vmatpush.bf16.msra.mxu0 %v2858
    %3384 = vmatpush.bf16.msra.mxu0 %v2857
    %3385 = vmatpush.bf16.msra.mxu0 %v2856
    %3386 = vmatmul.bf16.gmra.mxu0 %v1270
    %v3387 = vpop.f32.mrf.mxu0
    %v3388 = vadd.f32 %v3375, %v3387
    %v3389 = vpop.f32.mrf.mxu0
    %3390 = vdwg.mxu0
    %3391 = vmatpush.bf16.msra.mxu0 %v2871
    %3392 = vmatpush.bf16.msra.mxu0 %v2870
    %3393 = vmatpush.bf16.msra.mxu0 %v2869
    %3394 = vmatpush.bf16.msra.mxu0 %v2868
    %3395 = vmatpush.bf16.msra.mxu0 %v2867
    %3396 = vmatpush.bf16.msra.mxu0 %v2866
    %3397 = vmatpush.bf16.msra.mxu0 %v2865
    %3398 = vmatpush.bf16.msra.mxu0 %v2864
    %3399 = vmatmul.bf16.gmra.mxu0 %v1271
    %v3400 = vpop.f32.mrf.mxu0
    %v3401 = vadd.f32 %v3388, %v3400
    %v3402 = vpop.f32.mrf.mxu0
    %3403 = vdwg.mxu0
    %3404 = vmatpush.bf16.msra.mxu0 %v2879
    %3405 = vmatpush.bf16.msra.mxu0 %v2878
    %3406 = vmatpush.bf16.msra.mxu0 %v2877
    %3407 = vmatpush.bf16.msra.mxu0 %v2876
    %3408 = vmatpush.bf16.msra.mxu0 %v2875
    %3409 = vmatpush.bf16.msra.mxu0 %v2874
    %3410 = vmatpush.bf16.msra.mxu0 %v2873
    %3411 = vmatpush.bf16.msra.mxu0 %v2872
    %3412 = vmatmul.bf16.gmra.mxu0 %v1272
    %v3413 = vpop.f32.mrf.mxu0
    %v3414 = vadd.f32 %v3401, %v3413
    %v3415 = vpop.f32.mrf.mxu0
    %3416 = vdwg.mxu0
    %3417 = vmatpush.bf16.msra.mxu0 %v2887
    %3418 = vmatpush.bf16.msra.mxu0 %v2886
    %3419 = vmatpush.bf16.msra.mxu0 %v2885
    %3420 = vmatpush.bf16.msra.mxu0 %v2884
    %3421 = vmatpush.bf16.msra.mxu0 %v2883
    %3422 = vmatpush.bf16.msra.mxu0 %v2882
    %3423 = vmatpush.bf16.msra.mxu0 %v2881
    %3424 = vmatpush.bf16.msra.mxu0 %v2880
    %3425 = vmatmul.bf16.gmra.mxu0 %v1273
    %v3426 = vpop.f32.mrf.mxu0
    %v3427 = vadd.f32 %v3414, %v3426
    %v3428 = vpop.f32.mrf.mxu0
    %3429 = vdwg.mxu0
    %3430 = vmatpush.bf16.msra.mxu0 %v2895
    %3431 = vmatpush.bf16.msra.mxu0 %v2894
    %3432 = vmatpush.bf16.msra.mxu0 %v2893
    %3433 = vmatpush.bf16.msra.mxu0 %v2892
    %3434 = vmatpush.bf16.msra.mxu0 %v2891
    %3435 = vmatpush.bf16.msra.mxu0 %v2890
    %3436 = vmatpush.bf16.msra.mxu0 %v2889
    %3437 = vmatpush.bf16.msra.mxu0 %v2888
    %3438 = vmatmul.bf16.gmra.mxu0 %v1274
    %v3439 = vpop.f32.mrf.mxu0
    %v3440 = vadd.f32 %v3427, %v3439
    %v3441 = vpop.f32.mrf.mxu0
    %3442 = vdwg.mxu0
    %3443 = vmatpush.bf16.msra.mxu0 %v2903
    %3444 = vmatpush.bf16.msra.mxu0 %v2902
    %3445 = vmatpush.bf16.msra.mxu0 %v2901
    %3446 = vmatpush.bf16.msra.mxu0 %v2900
    %3447 = vmatpush.bf16.msra.mxu0 %v2899
    %3448 = vmatpush.bf16.msra.mxu0 %v2898
    %3449 = vmatpush.bf16.msra.mxu0 %v2897
    %3450 = vmatpush.bf16.msra.mxu0 %v2896
    %3451 = vmatmul.bf16.gmra.mxu0 %v1275
    %v3452 = vpop.f32.mrf.mxu0
    %v3453 = vadd.f32 %v3440, %v3452
    %v3454 = vpop.f32.mrf.mxu0
    %3455 = vdwg.mxu0
    %3456 = vmatpush.bf16.msra.mxu0 %v2911
    %3457 = vmatpush.bf16.msra.mxu0 %v2910
    %3458 = vmatpush.bf16.msra.mxu0 %v2909
    %3459 = vmatpush.bf16.msra.mxu0 %v2908
    %3460 = vmatpush.bf16.msra.mxu0 %v2907
    %3461 = vmatpush.bf16.msra.mxu0 %v2906
    %3462 = vmatpush.bf16.msra.mxu0 %v2905
    %3463 = vmatpush.bf16.msra.mxu0 %v2904
    %3464 = vmatmul.bf16.gmra.mxu0 %v1276
    %v3465 = vpop.f32.mrf.mxu0
    %v3466 = vadd.f32 %v3453, %v3465
    %v3467 = vpop.f32.mrf.mxu0
    %3468 = vdwg.mxu0
    %3469 = vmatpush.bf16.msra.mxu0 %v2919
    %3470 = vmatpush.bf16.msra.mxu0 %v2918
    %3471 = vmatpush.bf16.msra.mxu0 %v2917
    %3472 = vmatpush.bf16.msra.mxu0 %v2916
    %3473 = vmatpush.bf16.msra.mxu0 %v2915
    %3474 = vmatpush.bf16.msra.mxu0 %v2914
    %3475 = vmatpush.bf16.msra.mxu0 %v2913
    %3476 = vmatpush.bf16.msra.mxu0 %v2912
    %3477 = vmatmul.bf16.gmra.mxu0 %v1277
    %v3478 = vpop.f32.mrf.mxu0
    %v3479 = vadd.f32 %v3466, %v3478
    %v3480 = vpop.f32.mrf.mxu0
    %3481 = vdwg.mxu0
    %3482 = vmatpush.bf16.msra.mxu0 %v2927
    %3483 = vmatpush.bf16.msra.mxu0 %v2926
    %3484 = vmatpush.bf16.msra.mxu0 %v2925
    %3485 = vmatpush.bf16.msra.mxu0 %v2924
    %3486 = vmatpush.bf16.msra.mxu0 %v2923
    %3487 = vmatpush.bf16.msra.mxu0 %v2922
    %3488 = vmatpush.bf16.msra.mxu0 %v2921
    %3489 = vmatpush.bf16.msra.mxu0 %v2920
    %3490 = vmatmul.bf16.gmra.mxu0 %v1278
    %v3491 = vpop.f32.mrf.mxu0
    %v3492 = vadd.f32 %v3479, %v3491
    %v3493 = vpop.f32.mrf.mxu0
    %3494 = vdwg.mxu0
    %3495 = vmatpush.bf16.msra.mxu0 %v2935
    %3496 = vmatpush.bf16.msra.mxu0 %v2934
    %3497 = vmatpush.bf16.msra.mxu0 %v2933
    %3498 = vmatpush.bf16.msra.mxu0 %v2932
    %3499 = vmatpush.bf16.msra.mxu0 %v2931
    %3500 = vmatpush.bf16.msra.mxu0 %v2930
    %3501 = vmatpush.bf16.msra.mxu0 %v2929
    %3502 = vmatpush.bf16.msra.mxu0 %v2928
    %3503 = vmatmul.bf16.gmra.mxu0 %v1279
    %v3504 = vpop.f32.mrf.mxu0
    %v3505 = vadd.f32 %v3492, %v3504
    %v3506 = vpop.f32.mrf.mxu0
    %3507 = vdwg.mxu0
    %3508 = vmatpush.bf16.msra.mxu0 %v2943
    %3509 = vmatpush.bf16.msra.mxu0 %v2942
    %3510 = vmatpush.bf16.msra.mxu0 %v2941
    %3511 = vmatpush.bf16.msra.mxu0 %v2940
    %3512 = vmatpush.bf16.msra.mxu0 %v2939
    %3513 = vmatpush.bf16.msra.mxu0 %v2938
    %3514 = vmatpush.bf16.msra.mxu0 %v2937
    %3515 = vmatpush.bf16.msra.mxu0 %v2936
    %3516 = vmatmul.bf16.gmra.mxu0 %v1280
    %v3517 = vpop.f32.mrf.mxu0
    %v3518 = vadd.f32 %v3505, %v3517
    %v3519 = vpop.f32.mrf.mxu0
    %3520 = vdwg.mxu0
    %3521 = vmatpush.bf16.msra.mxu0 %v2951
    %3522 = vmatpush.bf16.msra.mxu0 %v2950
    %3523 = vmatpush.bf16.msra.mxu0 %v2949
    %3524 = vmatpush.bf16.msra.mxu0 %v2948
    %3525 = vmatpush.bf16.msra.mxu0 %v2947
    %3526 = vmatpush.bf16.msra.mxu0 %v2946
    %3527 = vmatpush.bf16.msra.mxu0 %v2945
    %3528 = vmatpush.bf16.msra.mxu0 %v2944
    %3529 = vmatmul.bf16.gmra.mxu0 %v1281
    %v3530 = vpop.f32.mrf.mxu0
    %v3531 = vadd.f32 %v3518, %v3530
    %v3532 = vpop.f32.mrf.mxu0
    %3533 = vdwg.mxu0
    %3534 = vmatpush.bf16.msra.mxu0 %v2959
    %3535 = vmatpush.bf16.msra.mxu0 %v2958
    %3536 = vmatpush.bf16.msra.mxu0 %v2957
    %3537 = vmatpush.bf16.msra.mxu0 %v2956
    %3538 = vmatpush.bf16.msra.mxu0 %v2955
    %3539 = vmatpush.bf16.msra.mxu0 %v2954
    %3540 = vmatpush.bf16.msra.mxu0 %v2953
    %3541 = vmatpush.bf16.msra.mxu0 %v2952
    %3542 = vmatmul.bf16.gmra.mxu0 %v1282
    %v3543 = vpop.f32.mrf.mxu0
    %v3544 = vadd.f32 %v3531, %v3543
    %v3545 = vpop.f32.mrf.mxu0
    %3546 = vdwg.mxu0
    %3547 = vmatpush.bf16.msra.mxu0 %v2967
    %3548 = vmatpush.bf16.msra.mxu0 %v2966
    %3549 = vmatpush.bf16.msra.mxu0 %v2965
    %3550 = vmatpush.bf16.msra.mxu0 %v2964
    %3551 = vmatpush.bf16.msra.mxu0 %v2963
    %3552 = vmatpush.bf16.msra.mxu0 %v2962
    %3553 = vmatpush.bf16.msra.mxu0 %v2961
    %3554 = vmatpush.bf16.msra.mxu0 %v2960
    %3555 = vmatmul.bf16.gmra.mxu0 %v1283
    %v3556 = vpop.f32.mrf.mxu0
    %v3557 = vadd.f32 %v3544, %v3556
    %v3558 = vpop.f32.mrf.mxu0
    %3559 = vdwg.mxu0
    %3560 = vmatpush.bf16.msra.mxu0 %v2975
    %3561 = vmatpush.bf16.msra.mxu0 %v2974
    %3562 = vmatpush.bf16.msra.mxu0 %v2973
    %3563 = vmatpush.bf16.msra.mxu0 %v2972
    %3564 = vmatpush.bf16.msra.mxu0 %v2971
    %3565 = vmatpush.bf16.msra.mxu0 %v2970
    %3566 = vmatpush.bf16.msra.mxu0 %v2969
    %3567 = vmatpush.bf16.msra.mxu0 %v2968
    %3568 = vmatmul.bf16.gmra.mxu0 %v1284
    %v3569 = vpop.f32.mrf.mxu0
    %v3570 = vadd.f32 %v3557, %v3569
    %v3571 = vpop.f32.mrf.mxu0
    %3572 = vdwg.mxu0
    %3573 = vmatpush.bf16.msra.mxu0 %v2983
    %3574 = vmatpush.bf16.msra.mxu0 %v2982
    %3575 = vmatpush.bf16.msra.mxu0 %v2981
    %3576 = vmatpush.bf16.msra.mxu0 %v2980
    %3577 = vmatpush.bf16.msra.mxu0 %v2979
    %3578 = vmatpush.bf16.msra.mxu0 %v2978
    %3579 = vmatpush.bf16.msra.mxu0 %v2977
    %3580 = vmatpush.bf16.msra.mxu0 %v2976
    %3581 = vmatmul.bf16.gmra.mxu0 %v1285
    %v3582 = vpop.f32.mrf.mxu0
    %v3583 = vadd.f32 %v3570, %v3582
    %v3584 = vpop.f32.mrf.mxu0
    %3585 = vdwg.mxu0
    %3586 = vmatpush.bf16.msra.mxu0 %v2991
    %3587 = vmatpush.bf16.msra.mxu0 %v2990
    %3588 = vmatpush.bf16.msra.mxu0 %v2989
    %3589 = vmatpush.bf16.msra.mxu0 %v2988
    %3590 = vmatpush.bf16.msra.mxu0 %v2987
    %3591 = vmatpush.bf16.msra.mxu0 %v2986
    %3592 = vmatpush.bf16.msra.mxu0 %v2985
    %3593 = vmatpush.bf16.msra.mxu0 %v2984
    %3594 = vmatmul.bf16.gmra.mxu0 %v1286
    %v3595 = vpop.f32.mrf.mxu0
    %v3596 = vadd.f32 %v3583, %v3595
    %v3597 = vpop.f32.mrf.mxu0
    %3598 = vdwg.mxu0
    %3599 = vmatpush.bf16.msra.mxu0 %v2999
    %3600 = vmatpush.bf16.msra.mxu0 %v2998
    %3601 = vmatpush.bf16.msra.mxu0 %v2997
    %3602 = vmatpush.bf16.msra.mxu0 %v2996
    %3603 = vmatpush.bf16.msra.mxu0 %v2995
    %3604 = vmatpush.bf16.msra.mxu0 %v2994
    %3605 = vmatpush.bf16.msra.mxu0 %v2993
    %3606 = vmatpush.bf16.msra.mxu0 %v2992
    %3607 = vmatmul.bf16.gmra.mxu0 %v1287
    %v3608 = vpop.f32.mrf.mxu0
    %v3609 = vadd.f32 %v3596, %v3608
    %v3610 = vpop.f32.mrf.mxu0
    %3611 = vdwg.mxu0
    %3612 = vmatpush.bf16.msra.mxu0 %v3007
    %3613 = vmatpush.bf16.msra.mxu0 %v3006
    %3614 = vmatpush.bf16.msra.mxu0 %v3005
    %3615 = vmatpush.bf16.msra.mxu0 %v3004
    %3616 = vmatpush.bf16.msra.mxu0 %v3003
    %3617 = vmatpush.bf16.msra.mxu0 %v3002
    %3618 = vmatpush.bf16.msra.mxu0 %v3001
    %3619 = vmatpush.bf16.msra.mxu0 %v3000
    %3620 = vmatmul.bf16.gmra.mxu0 %v1288
    %v3621 = vpop.f32.mrf.mxu0
    %v3622 = vadd.f32 %v3609, %v3621
    %v3623 = vpop.f32.mrf.mxu0
    %3624 = vdwg.mxu0
    %3625 = vmatpush.bf16.msra.mxu0 %v3015
    %3626 = vmatpush.bf16.msra.mxu0 %v3014
    %3627 = vmatpush.bf16.msra.mxu0 %v3013
    %3628 = vmatpush.bf16.msra.mxu0 %v3012
    %3629 = vmatpush.bf16.msra.mxu0 %v3011
    %3630 = vmatpush.bf16.msra.mxu0 %v3010
    %3631 = vmatpush.bf16.msra.mxu0 %v3009
    %3632 = vmatpush.bf16.msra.mxu0 %v3008
    %3633 = vmatmul.bf16.gmra.mxu0 %v1289
    %v3634 = vpop.f32.mrf.mxu0
    %v3635 = vadd.f32 %v3622, %v3634
    %v3636 = vpop.f32.mrf.mxu0
    %3637 = vdwg.mxu0
    %3638 = vmatpush.bf16.msra.mxu0 %v3023
    %3639 = vmatpush.bf16.msra.mxu0 %v3022
    %3640 = vmatpush.bf16.msra.mxu0 %v3021
    %3641 = vmatpush.bf16.msra.mxu0 %v3020
    %3642 = vmatpush.bf16.msra.mxu0 %v3019
    %3643 = vmatpush.bf16.msra.mxu0 %v3018
    %3644 = vmatpush.bf16.msra.mxu0 %v3017
    %3645 = vmatpush.bf16.msra.mxu0 %v3016
    %3646 = vmatmul.bf16.gmra.mxu0 %v1290
    %v3647 = vpop.f32.mrf.mxu0
    %v3648 = vadd.f32 %v3635, %v3647
    %v3649 = vpop.f32.mrf.mxu0
    %3650 = vdwg.mxu0
    %3651 = vmatpush.bf16.msra.mxu0 %v3031
    %3652 = vmatpush.bf16.msra.mxu0 %v3030
    %3653 = vmatpush.bf16.msra.mxu0 %v3029
    %3654 = vmatpush.bf16.msra.mxu0 %v3028
    %3655 = vmatpush.bf16.msra.mxu0 %v3027
    %3656 = vmatpush.bf16.msra.mxu0 %v3026
    %3657 = vmatpush.bf16.msra.mxu0 %v3025
    %3658 = vmatpush.bf16.msra.mxu0 %v3024
    %3659 = vmatmul.bf16.gmra.mxu0 %v1291
    %v3660 = vpop.f32.mrf.mxu0
    %v3661 = vadd.f32 %v3648, %v3660
    %v3662 = vpop.f32.mrf.mxu0
    %3663 = vdwg.mxu0
    %3664 = vmatpush.bf16.msra.mxu0 %v3039
    %3665 = vmatpush.bf16.msra.mxu0 %v3038
    %3666 = vmatpush.bf16.msra.mxu0 %v3037
    %3667 = vmatpush.bf16.msra.mxu0 %v3036
    %3668 = vmatpush.bf16.msra.mxu0 %v3035
    %3669 = vmatpush.bf16.msra.mxu0 %v3034
    %3670 = vmatpush.bf16.msra.mxu0 %v3033
    %3671 = vmatpush.bf16.msra.mxu0 %v3032
    %3672 = vmatmul.bf16.gmra.mxu0 %v1292
    %v3673 = vpop.f32.mrf.mxu0
    %v3674 = vadd.f32 %v3661, %v3673
    %v3675 = vpop.f32.mrf.mxu0
    %3676 = vdwg.mxu0
    %3677 = vmatpush.bf16.msra.mxu0 %v3047
    %3678 = vmatpush.bf16.msra.mxu0 %v3046
    %3679 = vmatpush.bf16.msra.mxu0 %v3045
    %3680 = vmatpush.bf16.msra.mxu0 %v3044
    %3681 = vmatpush.bf16.msra.mxu0 %v3043
    %3682 = vmatpush.bf16.msra.mxu0 %v3042
    %3683 = vmatpush.bf16.msra.mxu0 %v3041
    %3684 = vmatpush.bf16.msra.mxu0 %v3040
    %3685 = vmatmul.bf16.gmra.mxu0 %v1293
    %v3686 = vpop.f32.mrf.mxu0
    %v3687 = vadd.f32 %v3674, %v3686
    %v3688 = vpop.f32.mrf.mxu0
    %3689 = vdwg.mxu0
    %3690 = vmatpush.bf16.msra.mxu0 %v3055
    %3691 = vmatpush.bf16.msra.mxu0 %v3054
    %3692 = vmatpush.bf16.msra.mxu0 %v3053
    %3693 = vmatpush.bf16.msra.mxu0 %v3052
    %3694 = vmatpush.bf16.msra.mxu0 %v3051
    %3695 = vmatpush.bf16.msra.mxu0 %v3050
    %3696 = vmatpush.bf16.msra.mxu0 %v3049
    %3697 = vmatpush.bf16.msra.mxu0 %v3048
    %3698 = vmatmul.bf16.gmra.mxu0 %v1294
    %v3699 = vpop.f32.mrf.mxu0
    %v3700 = vadd.f32 %v3687, %v3699
    %v3701 = vpop.f32.mrf.mxu0
    %3702 = vdwg.mxu0
    %3703 = vmatpush.bf16.msra.mxu0 %v3063
    %3704 = vmatpush.bf16.msra.mxu0 %v3062
    %3705 = vmatpush.bf16.msra.mxu0 %v3061
    %3706 = vmatpush.bf16.msra.mxu0 %v3060
    %3707 = vmatpush.bf16.msra.mxu0 %v3059
    %3708 = vmatpush.bf16.msra.mxu0 %v3058
    %3709 = vmatpush.bf16.msra.mxu0 %v3057
    %3710 = vmatpush.bf16.msra.mxu0 %v3056
    %3711 = vmatmul.bf16.gmra.mxu0 %v1295
    %v3712 = vpop.f32.mrf.mxu0
    %v3713 = vadd.f32 %v3700, %v3712
    %v3714 = vpop.f32.mrf.mxu0
    %3715 = vdwg.mxu0
    %3716 = vmatpush.bf16.msra.mxu0 %v3071
    %3717 = vmatpush.bf16.msra.mxu0 %v3070
    %3718 = vmatpush.bf16.msra.mxu0 %v3069
    %3719 = vmatpush.bf16.msra.mxu0 %v3068
    %3720 = vmatpush.bf16.msra.mxu0 %v3067
    %3721 = vmatpush.bf16.msra.mxu0 %v3066
    %3722 = vmatpush.bf16.msra.mxu0 %v3065
    %3723 = vmatpush.bf16.msra.mxu0 %v3064
    %3724 = vmatmul.bf16.gmra.mxu0 %v1296
    %v3725 = vpop.f32.mrf.mxu0
    %v3726 = vadd.f32 %v3713, %v3725
    %v3727 = vpop.f32.mrf.mxu0
    %3728 = vdwg.mxu0
    %3729 = vmatpush.bf16.msra.mxu0 %v3079
    %3730 = vmatpush.bf16.msra.mxu0 %v3078
    %3731 = vmatpush.bf16.msra.mxu0 %v3077
    %3732 = vmatpush.bf16.msra.mxu0 %v3076
    %3733 = vmatpush.bf16.msra.mxu0 %v3075
    %3734 = vmatpush.bf16.msra.mxu0 %v3074
    %3735 = vmatpush.bf16.msra.mxu0 %v3073
    %3736 = vmatpush.bf16.msra.mxu0 %v3072
    %3737 = vmatmul.bf16.gmra.mxu0 %v1297
    %v3738 = vpop.f32.mrf.mxu0
    %v3739 = vadd.f32 %v3726, %v3738
    %v3740 = vpop.f32.mrf.mxu0
    %3741 = vdwg.mxu0
    %3742 = vmatpush.bf16.msra.mxu0 %v3087
    %3743 = vmatpush.bf16.msra.mxu0 %v3086
    %3744 = vmatpush.bf16.msra.mxu0 %v3085
    %3745 = vmatpush.bf16.msra.mxu0 %v3084
    %3746 = vmatpush.bf16.msra.mxu0 %v3083
    %3747 = vmatpush.bf16.msra.mxu0 %v3082
    %3748 = vmatpush.bf16.msra.mxu0 %v3081
    %3749 = vmatpush.bf16.msra.mxu0 %v3080
    %3750 = vmatmul.bf16.gmra.mxu0 %v1298
    %v3751 = vpop.f32.mrf.mxu0
    %v3752 = vadd.f32 %v3739, %v3751
    %v3753 = vpop.f32.mrf.mxu0
    %3754 = vdwg.mxu0
    %3755 = vmatpush.bf16.msra.mxu0 %v3095
    %3756 = vmatpush.bf16.msra.mxu0 %v3094
    %3757 = vmatpush.bf16.msra.mxu0 %v3093
    %3758 = vmatpush.bf16.msra.mxu0 %v3092
    %3759 = vmatpush.bf16.msra.mxu0 %v3091
    %3760 = vmatpush.bf16.msra.mxu0 %v3090
    %3761 = vmatpush.bf16.msra.mxu0 %v3089
    %3762 = vmatpush.bf16.msra.mxu0 %v3088
    %3763 = vmatmul.bf16.gmra.mxu0 %v1299
    %v3764 = vpop.f32.mrf.mxu0
    %v3765 = vadd.f32 %v3752, %v3764
    %v3766 = vpop.f32.mrf.mxu0
    %3767 = vdwg.mxu0
    %vm3768 = vcmask 58368
    %v3769 = vsel %vm3768, %v3765, -inf
    %3770 = vmax.xlane.f32.xlu0 %v3769
    %v3771 = vpop.xlane.xlu0 %3770
    %v3772 = vsub.f32 %v3765, %v3771
    %v3773 = vmul.f32 %v3772, 1.442695
    %v3774 = vpow.pop %v3773
    %v3775 = vsel %vm3768, %v3774, 0.0
    %3776 = vadd.xlane.f32.xlu0 %v3775
    %v3777 = vpop.xlane.xlu0 %3776
    %v3778 = vlog2.pop %v3777
    %v3779 = vmul.f32 %v3778, 0.6931472
    %v3780 = vsub.f32 %v3772, %v3779
    %3781 = vst.msk [vmem:[#allocation2] sm:$0x3] %vm3768, %v3780
    // Predicated region
    $region18: #{discriminator_forward.1} parent=1 // pred_check
      _
    $region19: #{discriminator_forward.1} parent=1 // pred_check_branch
      %3783 = sbr.rel (0) target = $region21
    $region20: #{discriminator_forward.1} parent=1 // pred_region
      %3785 = vsyncadd [#allocation3], 0
      %s3787 = sshll.u32 [#allocation2], 4
      %s3788 = int_to_ptr.vmem [resolvable:$true] %s3787
      %s3789 = sshll.u32 %s4, 4
      %s3790 = int_to_ptr.hbm [resolvable:$true] %s3789
      %3792 = dma.vmem_to_hbm [thread:$0]  %s3788, 32, %s3790, [#allocation3]
    $region21: #{discriminator_forward.1} parent=1 // pred_fallthru
      _
    // Predicated region
    $region22: #{discriminator_forward.1} parent=1 // pred_check
      _
    $region23: #{discriminator_forward.1} parent=1 // pred_check_branch
      %3794 = sbr.rel (0) target = $region25
    $region24: #{discriminator_forward.1} parent=1 // pred_region
      %3796 = dma.done [#allocation3], 32
    $region25: #{discriminator_forward.1} parent=1 // pred_fallthru
      _
    %3797 = vsyncpa [#allocation3], 1

</llo_original>
